<compile_context>
chip_gen: v7x
topology: tpu7x:2x2x1
jax: 0.10.0
libtpu: 0.0.40
codegen_flags: <defaults>
</compile_context>

<pallas_src>
import jax
import jax.numpy as jnp
from jax.experimental import pallas as pl
from jax.experimental.pallas import tpu as pltpu


LAYER_DIMS = [28 * 28, 512, 256, 128, 64, 10]
_LANE = 128


def _round_up(x, m):
    return ((x + m - 1) // m) * m


def _mlp_kernel(x_ref,
                w1_ref, b1_ref,
                w2_ref, b2_ref,
                w3_ref, b3_ref,
                w4_ref, b4_ref,
                w5_ref, b5_ref,
                o_ref):
    """Fused MLP: bf16 MXU matmuls, f32 accumulation / bias / ReLU."""
    def dense_relu(h_bf16, w_ref, b_ref):
        acc = jnp.dot(h_bf16, w_ref[...], preferred_element_type=jnp.float32)
        acc = acc + b_ref[...]              # (1, out) broadcasts over batch
        return jnp.maximum(acc, 0.0)        # ReLU in f32

    h = x_ref[...]                                              # bf16 (bm, 784)
    h = dense_relu(h, w1_ref, b1_ref).astype(jnp.bfloat16)      # 784 -> 512
    h = dense_relu(h, w2_ref, b2_ref).astype(jnp.bfloat16)      # 512 -> 256
    h = dense_relu(h, w3_ref, b3_ref).astype(jnp.bfloat16)      # 256 -> 128
    h = dense_relu(h, w4_ref, b4_ref).astype(jnp.bfloat16)      # 128 -> 128 (64 + pad)
    h = dense_relu(h, w5_ref, b5_ref)                           # 128 -> 128 (10 + pad)
    o_ref[...] = h.astype(o_ref.dtype)


def _prepare_params(params):
    """Cast weights to bf16 and lane-pad the narrow tail layers to 128."""
    (w1, b1), (w2, b2), (w3, b3), (w4, b4), (w5, b5) = params

    def pad_to(a, shape):
        return jnp.pad(a, [(0, t - s) for s, t in zip(a.shape, shape)])

    w4p = pad_to(w4, (w4.shape[0], _LANE))   # (128, 64)  -> (128, 128)
    b4p = pad_to(b4, (1, _LANE))
    w5p = pad_to(w5, (_LANE, _LANE))         # (64, 10)   -> (128, 128)
    b5p = pad_to(b5, (1, _LANE))

    padded = [(w1, b1), (w2, b2), (w3, b3), (w4p, b4p), (w5p, b5p)]
    # bf16 weights for MXU throughput; biases stay f32 (added to f32 accumulator).
    return [(w.astype(jnp.bfloat16), b.astype(jnp.float32)) for w, b in padded]


def _choose_block_m(batch):
    bm = min(256, _round_up(batch, 8))
    # Prefer >=2 grid steps when the batch allows it (both TCs on v7x).
    if batch >= 16 and pl.cdiv(batch, bm) < 2:
        bm = _round_up(pl.cdiv(batch, 2), 8)
    return bm


def mlp_forward(x, params, *, block_m=None):
    """x: (B, 784); params: list of (W_(in,out), b_(1,out)) per layer (f32)."""
    B, D = x.shape
    n_out = params[-1][1].shape[-1]                  # true output width: 10

    if block_m is None:
        block_m = _choose_block_m(B)

    padded_b = _round_up(B, block_m)
    xp = x.astype(jnp.bfloat16)
    if padded_b != B:
        xp = jnp.pad(xp, ((0, padded_b - B), (0, 0)))

    prepared = _prepare_params(params)
    n_out_padded = prepared[-1][0].shape[-1]         # 128, lane-dense store

    grid = (padded_b // block_m,)

    in_specs = [pl.BlockSpec((block_m, D), lambda i: (i, 0))]
    flat_params = []
    for (w, b) in prepared:
        # Grid-invariant -> single-buffered: halves resident weight VMEM.
        in_specs.append(pl.BlockSpec(w.shape, lambda i: (0, 0),
                                     pipeline_mode=pl.Buffered(1)))
        in_specs.append(pl.BlockSpec(b.shape, lambda i: (0, 0),
                                     pipeline_mode=pl.Buffered(1)))
        flat_params.extend([w, b])

    out_spec = pl.BlockSpec((block_m, n_out_padded), lambda i: (i, 0))

    # Advisory cost estimate for the XLA scheduler.
    dims = [D] + [w.shape[-1] for w, _ in prepared]
    flops = 2 * padded_b * sum(a * b for a, b in zip(dims[:-1], dims[1:]))
    bytes_accessed = (xp.size * xp.dtype.itemsize
                      + sum(w.size * w.dtype.itemsize + b.size * b.dtype.itemsize
                            for w, b in prepared)
                      + padded_b * n_out_padded * 4)
    cost = pl.CostEstimate(flops=flops, transcendentals=0,
                           bytes_accessed=bytes_accessed)

    out = pl.pallas_call(
        _mlp_kernel,
        out_shape=jax.ShapeDtypeStruct((padded_b, n_out_padded), jnp.float32),
        grid_spec=pltpu.PrefetchScalarGridSpec(
            num_scalar_prefetch=0,
            grid=grid,
            in_specs=in_specs,
            out_specs=out_spec,
        ),
        compiler_params=pltpu.CompilerParams(
            dimension_semantics=("parallel",)),
        cost_estimate=cost,
    )(xp, *flat_params)

    return out[:B, :n_out]


def init_params(key):
    """Deterministic init mimicking torch.nn.Linear default (uniform +-1/sqrt(in))."""
    params = []
    for i in range(len(LAYER_DIMS) - 1):
        fan_in, fan_out = LAYER_DIMS[i], LAYER_DIMS[i + 1]
        key, kw, kb = jax.random.split(key, 3)
        bound = 1.0 / (fan_in ** 0.5)
        # PyTorch stores (out, in); we store transposed (in, out) for x @ W.
        w = jax.random.uniform(kw, (fan_in, fan_out), jnp.float32, -bound, bound)
        b = jax.random.uniform(kb, (1, fan_out), jnp.float32, -bound, bound)
        params.append((w, b))
    return params


def reference_forward_f32(x, params):
    h = x
    for (w, b) in params:
        h = jnp.maximum(h @ w + b, 0.0)     # ReLU after every layer, incl. last
    return h


def reference_forward_bf16(x, params):
    """Same bf16-operand / f32-accumulate path as the kernel."""
    h = x.astype(jnp.bfloat16)
    for (w, b) in params:
        acc = jnp.dot(h, w.astype(jnp.bfloat16),
                      preferred_element_type=jnp.float32) + b
        h = jnp.maximum(acc, 0.0).astype(jnp.bfloat16)
    return h.astype(jnp.float32)


if __name__ == "__main__":
    key = jax.random.PRNGKey(0)
    key, kx = jax.random.split(key)
    batch = 64                              # small, but >1 grid step (block_m=32)
    x = jax.random.normal(kx, (batch, 28 * 28), dtype=jnp.float32)

    params = init_params(key)

    out = mlp_forward(x, params)
    out = jax.block_until_ready(out)
    assert out.shape == (batch, 10)

    ref_bf16 = reference_forward_bf16(x, params)
    ref_f32 = reference_forward_f32(x, params)
    assert jnp.allclose(out, ref_bf16, atol=2e-2, rtol=2e-2)
    assert jnp.allclose(out, ref_f32, atol=5e-2, rtol=5e-2)

    print("KERNEL_OK")
</pallas_src>

<mosaic_0001>
module attributes {stable_mosaic.version = 11 : i64} {
  func.func @_mlp_kernel(%arg0: i32, %arg1: memref<32x784xbf16, #tpu.memory_space<vmem>>, %arg2: memref<784x512xbf16, #tpu.memory_space<vmem>>, %arg3: memref<1x512xf32, #tpu.memory_space<vmem>>, %arg4: memref<512x256xbf16, #tpu.memory_space<vmem>>, %arg5: memref<1x256xf32, #tpu.memory_space<vmem>>, %arg6: memref<256x128xbf16, #tpu.memory_space<vmem>>, %arg7: memref<1x128xf32, #tpu.memory_space<vmem>>, %arg8: memref<128x128xbf16, #tpu.memory_space<vmem>>, %arg9: memref<1x128xf32, #tpu.memory_space<vmem>>, %arg10: memref<128x128xbf16, #tpu.memory_space<vmem>>, %arg11: memref<1x128xf32, #tpu.memory_space<vmem>>, %arg12: memref<32x128xf32, #tpu.memory_space<vmem>>) attributes {dimension_semantics = [#tpu.dimension_semantics<parallel>], iteration_bounds = array<i64: 2>, scalar_prefetch = 0 : i64, scratch_operands = 0 : i64, tpu.core_type = #tpu.core_type<tc>, window_params = [{transform_indices = @transform_0, window_bounds = array<i64: 32, 784>}, {pipeline_mode = #tpu.pipeline_mode<synchronous>, transform_indices = @transform_1, window_bounds = array<i64: 784, 512>}, {pipeline_mode = #tpu.pipeline_mode<synchronous>, transform_indices = @transform_2, window_bounds = array<i64: 1, 512>}, {pipeline_mode = #tpu.pipeline_mode<synchronous>, transform_indices = @transform_3, window_bounds = array<i64: 512, 256>}, {pipeline_mode = #tpu.pipeline_mode<synchronous>, transform_indices = @transform_4, window_bounds = array<i64: 1, 256>}, {pipeline_mode = #tpu.pipeline_mode<synchronous>, transform_indices = @transform_5, window_bounds = array<i64: 256, 128>}, {pipeline_mode = #tpu.pipeline_mode<synchronous>, transform_indices = @transform_6, window_bounds = array<i64: 1, 128>}, {pipeline_mode = #tpu.pipeline_mode<synchronous>, transform_indices = @transform_7, window_bounds = array<i64: 128, 128>}, {pipeline_mode = #tpu.pipeline_mode<synchronous>, transform_indices = @transform_8, window_bounds = array<i64: 1, 128>}, {pipeline_mode = #tpu.pipeline_mode<synchronous>, transform_indices = @transform_9, window_bounds = array<i64: 128, 128>}, {pipeline_mode = #tpu.pipeline_mode<synchronous>, transform_indices = @transform_10, window_bounds = array<i64: 1, 128>}, {transform_indices = @transform_11, window_bounds = array<i64: 32, 128>}]} {
    %c0 = arith.constant 0 : index
    %c0_0 = arith.constant 0 : index
    %0 = vector.load %arg1[%c0, %c0_0] : memref<32x784xbf16, #tpu.memory_space<vmem>>, vector<32x784xbf16>
    %c0_1 = arith.constant 0 : index
    %c0_2 = arith.constant 0 : index
    %1 = vector.load %arg2[%c0_1, %c0_2] : memref<784x512xbf16, #tpu.memory_space<vmem>>, vector<784x512xbf16>
    %cst = arith.constant dense<0.000000e+00> : vector<32x512xf32>
    %2 = tpu.matmul %0, %1, %cst {dimension_numbers = #tpu.dot_dimension_numbers<[1], [0], [0], [1], [0, 0, 1, 1], [], []>} : vector<32x784xbf16>, vector<784x512xbf16>, vector<32x512xf32> -> vector<32x512xf32>
    %c0_3 = arith.constant 0 : index
    %c0_4 = arith.constant 0 : index
    %3 = vector.load %arg3[%c0_3, %c0_4] : memref<1x512xf32, #tpu.memory_space<vmem>>, vector<1x512xf32>
    %4 = vector.broadcast %3 : vector<1x512xf32> to vector<32x512xf32>
    %5 = arith.addf %2, %4 : vector<32x512xf32>
    %cst_5 = arith.constant 0.000000e+00 : f32
    %6 = vector.broadcast %cst_5 : f32 to vector<32x512xf32>
    %7 = arith.maximumf %5, %6 : vector<32x512xf32>
    %8 = arith.truncf %7 : vector<32x512xf32> to vector<32x512xbf16>
    %c0_6 = arith.constant 0 : index
    %c0_7 = arith.constant 0 : index
    %9 = vector.load %arg4[%c0_6, %c0_7] : memref<512x256xbf16, #tpu.memory_space<vmem>>, vector<512x256xbf16>
    %cst_8 = arith.constant dense<0.000000e+00> : vector<32x256xf32>
    %10 = tpu.matmul %8, %9, %cst_8 {dimension_numbers = #tpu.dot_dimension_numbers<[1], [0], [0], [1], [0, 0, 1, 1], [], []>} : vector<32x512xbf16>, vector<512x256xbf16>, vector<32x256xf32> -> vector<32x256xf32>
    %c0_9 = arith.constant 0 : index
    %c0_10 = arith.constant 0 : index
    %11 = vector.load %arg5[%c0_9, %c0_10] : memref<1x256xf32, #tpu.memory_space<vmem>>, vector<1x256xf32>
    %12 = vector.broadcast %11 : vector<1x256xf32> to vector<32x256xf32>
    %13 = arith.addf %10, %12 : vector<32x256xf32>
    %cst_11 = arith.constant 0.000000e+00 : f32
    %14 = vector.broadcast %cst_11 : f32 to vector<32x256xf32>
    %15 = arith.maximumf %13, %14 : vector<32x256xf32>
    %16 = arith.truncf %15 : vector<32x256xf32> to vector<32x256xbf16>
    %c0_12 = arith.constant 0 : index
    %c0_13 = arith.constant 0 : index
    %17 = vector.load %arg6[%c0_12, %c0_13] : memref<256x128xbf16, #tpu.memory_space<vmem>>, vector<256x128xbf16>
    %cst_14 = arith.constant dense<0.000000e+00> : vector<32x128xf32>
    %18 = tpu.matmul %16, %17, %cst_14 {dimension_numbers = #tpu.dot_dimension_numbers<[1], [0], [0], [1], [0, 0, 1, 1], [], []>} : vector<32x256xbf16>, vector<256x128xbf16>, vector<32x128xf32> -> vector<32x128xf32>
    %c0_15 = arith.constant 0 : index
    %c0_16 = arith.constant 0 : index
    %19 = vector.load %arg7[%c0_15, %c0_16] : memref<1x128xf32, #tpu.memory_space<vmem>>, vector<1x128xf32>
    %20 = vector.broadcast %19 : vector<1x128xf32> to vector<32x128xf32>
    %21 = arith.addf %18, %20 : vector<32x128xf32>
    %cst_17 = arith.constant 0.000000e+00 : f32
    %22 = vector.broadcast %cst_17 : f32 to vector<32x128xf32>
    %23 = arith.maximumf %21, %22 : vector<32x128xf32>
    %24 = arith.truncf %23 : vector<32x128xf32> to vector<32x128xbf16>
    %c0_18 = arith.constant 0 : index
    %c0_19 = arith.constant 0 : index
    %25 = vector.load %arg8[%c0_18, %c0_19] : memref<128x128xbf16, #tpu.memory_space<vmem>>, vector<128x128xbf16>
    %cst_20 = arith.constant dense<0.000000e+00> : vector<32x128xf32>
    %26 = tpu.matmul %24, %25, %cst_20 {dimension_numbers = #tpu.dot_dimension_numbers<[1], [0], [0], [1], [0, 0, 1, 1], [], []>} : vector<32x128xbf16>, vector<128x128xbf16>, vector<32x128xf32> -> vector<32x128xf32>
    %c0_21 = arith.constant 0 : index
    %c0_22 = arith.constant 0 : index
    %27 = vector.load %arg9[%c0_21, %c0_22] : memref<1x128xf32, #tpu.memory_space<vmem>>, vector<1x128xf32>
    %28 = vector.broadcast %27 : vector<1x128xf32> to vector<32x128xf32>
    %29 = arith.addf %26, %28 : vector<32x128xf32>
    %cst_23 = arith.constant 0.000000e+00 : f32
    %30 = vector.broadcast %cst_23 : f32 to vector<32x128xf32>
    %31 = arith.maximumf %29, %30 : vector<32x128xf32>
    %32 = arith.truncf %31 : vector<32x128xf32> to vector<32x128xbf16>
    %c0_24 = arith.constant 0 : index
    %c0_25 = arith.constant 0 : index
    %33 = vector.load %arg10[%c0_24, %c0_25] : memref<128x128xbf16, #tpu.memory_space<vmem>>, vector<128x128xbf16>
    %cst_26 = arith.constant dense<0.000000e+00> : vector<32x128xf32>
    %34 = tpu.matmul %32, %33, %cst_26 {dimension_numbers = #tpu.dot_dimension_numbers<[1], [0], [0], [1], [0, 0, 1, 1], [], []>} : vector<32x128xbf16>, vector<128x128xbf16>, vector<32x128xf32> -> vector<32x128xf32>
    %c0_27 = arith.constant 0 : index
    %c0_28 = arith.constant 0 : index
    %35 = vector.load %arg11[%c0_27, %c0_28] : memref<1x128xf32, #tpu.memory_space<vmem>>, vector<1x128xf32>
    %36 = vector.broadcast %35 : vector<1x128xf32> to vector<32x128xf32>
    %37 = arith.addf %34, %36 : vector<32x128xf32>
    %cst_29 = arith.constant 0.000000e+00 : f32
    %38 = vector.broadcast %cst_29 : f32 to vector<32x128xf32>
    %39 = arith.maximumf %37, %38 : vector<32x128xf32>
    %c0_30 = arith.constant 0 : index
    %c0_31 = arith.constant 0 : index
    %40 = vector.load %arg12[%c0_30, %c0_31] : memref<32x128xf32, #tpu.memory_space<vmem>>, vector<32x128xf32>
    tpu.vector_store %arg12[%c0_30, %c0_31], %39 {strides = array<i32>} : memref<32x128xf32, #tpu.memory_space<vmem>>, vector<32x128xf32>,
    return
  }
  func.func @transform_0(%arg0: i32) -> (i32, i32) {
    %c0_i32 = arith.constant 0 : i32
    %c0_i32_0 = arith.constant 0 : i32
    return %arg0, %c0_i32 : i32, i32
  }
  func.func @transform_1(%arg0: i32) -> (i32, i32) {
    %c0_i32 = arith.constant 0 : i32
    %c0_i32_0 = arith.constant 0 : i32
    %c0_i32_1 = arith.constant 0 : i32
    return %c0_i32, %c0_i32_0 : i32, i32
  }
  func.func @transform_2(%arg0: i32) -> (i32, i32) {
    %c0_i32 = arith.constant 0 : i32
    %c0_i32_0 = arith.constant 0 : i32
    %c0_i32_1 = arith.constant 0 : i32
    return %c0_i32, %c0_i32_0 : i32, i32
  }
  func.func @transform_3(%arg0: i32) -> (i32, i32) {
    %c0_i32 = arith.constant 0 : i32
    %c0_i32_0 = arith.constant 0 : i32
    %c0_i32_1 = arith.constant 0 : i32
    return %c0_i32, %c0_i32_0 : i32, i32
  }
  func.func @transform_4(%arg0: i32) -> (i32, i32) {
    %c0_i32 = arith.constant 0 : i32
    %c0_i32_0 = arith.constant 0 : i32
    %c0_i32_1 = arith.constant 0 : i32
    return %c0_i32, %c0_i32_0 : i32, i32
  }
  func.func @transform_5(%arg0: i32) -> (i32, i32) {
    %c0_i32 = arith.constant 0 : i32
    %c0_i32_0 = arith.constant 0 : i32
    %c0_i32_1 = arith.constant 0 : i32
    return %c0_i32, %c0_i32_0 : i32, i32
  }
  func.func @transform_6(%arg0: i32) -> (i32, i32) {
    %c0_i32 = arith.constant 0 : i32
    %c0_i32_0 = arith.constant 0 : i32
    %c0_i32_1 = arith.constant 0 : i32
    return %c0_i32, %c0_i32_0 : i32, i32
  }
  func.func @transform_7(%arg0: i32) -> (i32, i32) {
    %c0_i32 = arith.constant 0 : i32
    %c0_i32_0 = arith.constant 0 : i32
    %c0_i32_1 = arith.constant 0 : i32
    return %c0_i32, %c0_i32_0 : i32, i32
  }
  func.func @transform_8(%arg0: i32) -> (i32, i32) {
    %c0_i32 = arith.constant 0 : i32
    %c0_i32_0 = arith.constant 0 : i32
    %c0_i32_1 = arith.constant 0 : i32
    return %c0_i32, %c0_i32_0 : i32, i32
  }
  func.func @transform_9(%arg0: i32) -> (i32, i32) {
    %c0_i32 = arith.constant 0 : i32
    %c0_i32_0 = arith.constant 0 : i32
    %c0_i32_1 = arith.constant 0 : i32
    return %c0_i32, %c0_i32_0 : i32, i32
  }
  func.func @transform_10(%arg0: i32) -> (i32, i32) {
    %c0_i32 = arith.constant 0 : i32
    %c0_i32_0 = arith.constant 0 : i32
    %c0_i32_1 = arith.constant 0 : i32
    return %c0_i32, %c0_i32_0 : i32, i32
  }
  func.func @transform_11(%arg0: i32) -> (i32, i32) {
    %c0_i32 = arith.constant 0 : i32
    %c0_i32_0 = arith.constant 0 : i32
    return %arg0, %c0_i32 : i32, i32
  }
}

</mosaic_0001>

<llo_original>
// kernel: tpu_custom_call.1
$region0: #{tpu_custom_call.1}
  #allocation0 [shape = 'u32[]', space=smem, size = 0x4, offset = 0x4, fixed_abs, tag = 'smem constant byte address 0x4 - core index']
  #allocation1 [shape = 'u32[144,128]{1,0:T(1,128)}', space=vmem, size = 0x12000, scoped, tag = 'internal scratch']
  %s0 = inlined_call_operand.hbm [shape: bf16[64,784], index: 0, kind: input, shape index: {}]
  %s1 = inlined_call_operand.hbm [shape: bf16[784,512], index: 1, kind: input, shape index: {}]
  %s2 = inlined_call_operand.vmem [shape: f32[1,512], index: 2, kind: input, shape index: {}]
  %s3 = inlined_call_operand.hbm [shape: bf16[512,256], index: 3, kind: input, shape index: {}]
  %s4 = inlined_call_operand.vmem [shape: f32[1,256], index: 4, kind: input, shape index: {}]
  %s5 = inlined_call_operand.hbm [shape: bf16[256,128], index: 5, kind: input, shape index: {}]
  %s6 = inlined_call_operand.vmem [shape: f32[1,128], index: 6, kind: input, shape index: {}]
  %s7 = inlined_call_operand.hbm [shape: bf16[128,128], index: 7, kind: input, shape index: {}]
  %s8 = inlined_call_operand.vmem [shape: f32[1,128], index: 8, kind: input, shape index: {}]
  %s9 = inlined_call_operand.hbm [shape: bf16[128,128], index: 9, kind: input, shape index: {}]
  %s10 = inlined_call_operand.vmem [shape: f32[1,128], index: 10, kind: input, shape index: {}]
  %s11 = inlined_call_operand.hbm [shape: f32[64,128], index: 11, kind: output, shape index: {}]
  %s12 = sld [smem:[#allocation0]]
  $region101: #{tpu_custom_call.1} parent=0
    _
  %s14 = ssub.s32 1, %s12
  %s15 = scalar_select 0, %s14, %s12
  $region1: #{tpu_custom_call.1} parent=0
    #allocation2 [shape = 'u8[114688]{0}', space=vmem, size = 0x1c000, scoped, tag = 'input window, operand 0']
    #allocation3 [shape = 's32[2]{0}', space=sflag, size = 0x8, scoped, tag = 'scoped memory for tpu_custom_call.1']
    #allocation4 [shape = 's32[2]{0}', space=sflag, size = 0x8, scoped, tag = 'scoped memory for tpu_custom_call.1']
    #allocation5 [shape = 'u8[802816]{0}', space=vmem, size = 0xc4000, scoped, tag = 'input window, operand 1, single buffered']
    #allocation6 [shape = 's32[1]{0}', space=sflag, size = 0x4, scoped, tag = 'scoped memory for tpu_custom_call.1']
    #allocation7 [shape = 'u8[262144]{0}', space=vmem, size = 0x40000, scoped, tag = 'input window, operand 3, single buffered']
    #allocation8 [shape = 'u8[65536]{0}', space=vmem, size = 0x10000, scoped, tag = 'input window, operand 5, single buffered']
    #allocation9 [shape = 's32[1]{0}', space=sflag, size = 0x4, scoped, tag = 'scoped memory for tpu_custom_call.1']
    #allocation10 [shape = 'u8[32768]{0}', space=vmem, size = 0x8000, scoped, tag = 'input window, operand 7, single buffered']
    #allocation11 [shape = 'u8[32768]{0}', space=vmem, size = 0x8000, scoped, tag = 'input window, operand 9, single buffered']
    #allocation12 [shape = 's32[1]{0}', space=sflag, size = 0x4, scoped, tag = 'scoped memory for tpu_custom_call.1']
    #allocation13 [shape = 'u8[32768]{0}', space=vmem, size = 0x8000, scoped, tag = 'output window, operand 0']
    %16 = vsyncpa [#allocation3], 0
    %s17 = scalar_lea.sflag [#allocation3], 1
    %18 = vsyncpa %s17, 0
    %19 = vsyncpa [#allocation6], 0
    %20 = vsyncpa [#allocation9], 0
    %21 = vsyncpa [#allocation12], 0
    %22 = vsyncpa [#allocation4], 0
    %s23 = scalar_lea.sflag [#allocation4], 1
    %24 = vsyncpa %s23, 0
    loop: start=0, step=1, limit=4
    $region2: #{tpu_custom_call.1} parent=1 // loop_pre_header
      _
    $region3: #{tpu_custom_call.1} parent=1 // loop_header
      %s26 = sphi 0, %s30
      %p27 = scmp.ge.s32.totalorder %s26, 4
      %s36 = sphi 0, %s38
      %s39 = sphi 0, %s36
      %s40 = sphi 0, %s39
      %s56 = sphi 0, %s40
      %s60 = sphi 0, %s60
      %s62 = sphi 0, %s60
      %s63 = sphi 0, %s62
      %s77 = sphi 0, %s63
      %s81 = sphi 0, %s81
      %s83 = sphi 0, %s81
      %s84 = sphi 0, %s83
      %s98 = sphi 0, %s84
      %s102 = sphi 0, %s102
      %s104 = sphi 0, %s102
      %s105 = sphi 0, %s104
      %s119 = sphi 0, %s105
      %s123 = sphi 0, %s123
      %s125 = sphi 0, %s123
      %s126 = sphi 0, %s125
      %s140 = sphi 0, %s126
      %s144 = sphi 0, %s144
      %s146 = sphi 0, %s144
      %s147 = sphi 0, %s146
      %s161 = sphi 0, %s147
      %s165 = sphi 0, %s165
      %s167 = sphi 0, %s165
      %s168 = sphi 0, %s167
      %s182 = sphi 0, %s168
      %s186 = sphi 0, %s186
      %s188 = sphi 0, %s186
      %s189 = sphi 0, %s188
      %s203 = sphi 0, %s189
      %s207 = sphi 0, %s207
      %s209 = sphi 0, %s207
      %s210 = sphi 0, %s209
      %s224 = sphi 0, %s210
      %s228 = sphi 0, %s228
      %s230 = sphi 0, %s228
      %s231 = sphi 0, %s230
      %s245 = sphi 0, %s231
      %s249 = sphi 0, %s249
      %s251 = sphi 0, %s249
      %s252 = sphi 0, %s251
      %s266 = sphi 0, %s252
      %s272 = sphi 0, %s274
      %s275 = sphi 0, %s272
      %s276 = sphi 0, %s275
      %s292 = sphi 0, %s276
    $region4: #{tpu_custom_call.1} parent=1 // loop_header_branch
      %29 = sbr.rel (%p27) target = $region8
    $region5: #{tpu_custom_call.1} parent=1 // loop_body
      %s31 = ssub.s32 %s26, 1
      %s32 = ssub.s32 %s26, 2
      %s33 = sadd.s32 %s26, 1
      %s34 = ssub.s32 %s26, %s33
      %p35 = scmp.eq.s32.totalorder %s34, 0
      %s37 = sadd.s32 %s36, 1
      %s38 = scalar_select %p35, %s36, %s37
      %p41 = pneg %p35
      %p42 = scmp.eq.s32.totalorder %s26, 1
      %p43 = por %p41, %p42
      %p44 = scmp.ne.s32.totalorder %s36, %s39
      %p45 = scmp.eq.s32.totalorder %s26, 0
      %p46 = por %p44, %p45
      %p47 = scmp.ne.s32.totalorder %s36, %s39
      %p48 = scmp.eq.s32.totalorder %s31, 1
      %p49 = por %p47, %p48
      %p50 = scmp.ne.s32.totalorder %s39, %s40
      %p51 = scmp.eq.s32.totalorder %s31, 0
      %p52 = por %p50, %p51
      %p53 = scmp.ne.s32.totalorder %s39, %s40
      %p54 = scmp.eq.s32.totalorder %s32, 1
      %p55 = por %p53, %p54
      %p57 = scmp.ne.s32.totalorder %s40, %s56
      %p58 = scmp.eq.s32.totalorder %s32, 0
      %p59 = por %p57, %p58
      %s61 = sadd.s32 %s60, 1
      %p64 = scmp.eq.s32.totalorder %s26, 1
      %p65 = scmp.ne.s32.totalorder %s60, %s62
      %p66 = scmp.eq.s32.totalorder %s26, 0
      %p67 = por %p65, %p66
      %p68 = scmp.ne.s32.totalorder %s60, %s62
      %p69 = scmp.eq.s32.totalorder %s31, 1
      %p70 = por %p68, %p69
      %p71 = scmp.ne.s32.totalorder %s62, %s63
      %p72 = scmp.eq.s32.totalorder %s31, 0
      %p73 = por %p71, %p72
      %p74 = scmp.ne.s32.totalorder %s62, %s63
      %p75 = scmp.eq.s32.totalorder %s32, 1
      %p76 = por %p74, %p75
      %p78 = scmp.ne.s32.totalorder %s63, %s77
      %p79 = scmp.eq.s32.totalorder %s32, 0
      %p80 = por %p78, %p79
      %s82 = sadd.s32 %s81, 1
      %p85 = scmp.eq.s32.totalorder %s26, 1
      %p86 = scmp.ne.s32.totalorder %s81, %s83
      %p87 = scmp.eq.s32.totalorder %s26, 0
      %p88 = por %p86, %p87
      %p89 = scmp.ne.s32.totalorder %s81, %s83
      %p90 = scmp.eq.s32.totalorder %s31, 1
      %p91 = por %p89, %p90
      %p92 = scmp.ne.s32.totalorder %s83, %s84
      %p93 = scmp.eq.s32.totalorder %s31, 0
      %p94 = por %p92, %p93
      %p95 = scmp.ne.s32.totalorder %s83, %s84
      %p96 = scmp.eq.s32.totalorder %s32, 1
      %p97 = por %p95, %p96
      %p99 = scmp.ne.s32.totalorder %s84, %s98
      %p100 = scmp.eq.s32.totalorder %s32, 0
      %p101 = por %p99, %p100
      %s103 = sadd.s32 %s102, 1
      %p106 = scmp.eq.s32.totalorder %s26, 1
      %p107 = scmp.ne.s32.totalorder %s102, %s104
      %p108 = scmp.eq.s32.totalorder %s26, 0
      %p109 = por %p107, %p108
      %p110 = scmp.ne.s32.totalorder %s102, %s104
      %p111 = scmp.eq.s32.totalorder %s31, 1
      %p112 = por %p110, %p111
      %p113 = scmp.ne.s32.totalorder %s104, %s105
      %p114 = scmp.eq.s32.totalorder %s31, 0
      %p115 = por %p113, %p114
      %p116 = scmp.ne.s32.totalorder %s104, %s105
      %p117 = scmp.eq.s32.totalorder %s32, 1
      %p118 = por %p116, %p117
      %p120 = scmp.ne.s32.totalorder %s105, %s119
      %p121 = scmp.eq.s32.totalorder %s32, 0
      %p122 = por %p120, %p121
      %s124 = sadd.s32 %s123, 1
      %p127 = scmp.eq.s32.totalorder %s26, 1
      %p128 = scmp.ne.s32.totalorder %s123, %s125
      %p129 = scmp.eq.s32.totalorder %s26, 0
      %p130 = por %p128, %p129
      %p131 = scmp.ne.s32.totalorder %s123, %s125
      %p132 = scmp.eq.s32.totalorder %s31, 1
      %p133 = por %p131, %p132
      %p134 = scmp.ne.s32.totalorder %s125, %s126
      %p135 = scmp.eq.s32.totalorder %s31, 0
      %p136 = por %p134, %p135
      %p137 = scmp.ne.s32.totalorder %s125, %s126
      %p138 = scmp.eq.s32.totalorder %s32, 1
      %p139 = por %p137, %p138
      %p141 = scmp.ne.s32.totalorder %s126, %s140
      %p142 = scmp.eq.s32.totalorder %s32, 0
      %p143 = por %p141, %p142
      %s145 = sadd.s32 %s144, 1
      %p148 = scmp.eq.s32.totalorder %s26, 1
      %p149 = scmp.ne.s32.totalorder %s144, %s146
      %p150 = scmp.eq.s32.totalorder %s26, 0
      %p151 = por %p149, %p150
      %p152 = scmp.ne.s32.totalorder %s144, %s146
      %p153 = scmp.eq.s32.totalorder %s31, 1
      %p154 = por %p152, %p153
      %p155 = scmp.ne.s32.totalorder %s146, %s147
      %p156 = scmp.eq.s32.totalorder %s31, 0
      %p157 = por %p155, %p156
      %p158 = scmp.ne.s32.totalorder %s146, %s147
      %p159 = scmp.eq.s32.totalorder %s32, 1
      %p160 = por %p158, %p159
      %p162 = scmp.ne.s32.totalorder %s147, %s161
      %p163 = scmp.eq.s32.totalorder %s32, 0
      %p164 = por %p162, %p163
      %s166 = sadd.s32 %s165, 1
      %p169 = scmp.eq.s32.totalorder %s26, 1
      %p170 = scmp.ne.s32.totalorder %s165, %s167
      %p171 = scmp.eq.s32.totalorder %s26, 0
      %p172 = por %p170, %p171
      %p173 = scmp.ne.s32.totalorder %s165, %s167
      %p174 = scmp.eq.s32.totalorder %s31, 1
      %p175 = por %p173, %p174
      %p176 = scmp.ne.s32.totalorder %s167, %s168
      %p177 = scmp.eq.s32.totalorder %s31, 0
      %p178 = por %p176, %p177
      %p179 = scmp.ne.s32.totalorder %s167, %s168
      %p180 = scmp.eq.s32.totalorder %s32, 1
      %p181 = por %p179, %p180
      %p183 = scmp.ne.s32.totalorder %s168, %s182
      %p184 = scmp.eq.s32.totalorder %s32, 0
      %p185 = por %p183, %p184
      %s187 = sadd.s32 %s186, 1
      %p190 = scmp.eq.s32.totalorder %s26, 1
      %p191 = scmp.ne.s32.totalorder %s186, %s188
      %p192 = scmp.eq.s32.totalorder %s26, 0
      %p193 = por %p191, %p192
      %p194 = scmp.ne.s32.totalorder %s186, %s188
      %p195 = scmp.eq.s32.totalorder %s31, 1
      %p196 = por %p194, %p195
      %p197 = scmp.ne.s32.totalorder %s188, %s189
      %p198 = scmp.eq.s32.totalorder %s31, 0
      %p199 = por %p197, %p198
      %p200 = scmp.ne.s32.totalorder %s188, %s189
      %p201 = scmp.eq.s32.totalorder %s32, 1
      %p202 = por %p200, %p201
      %p204 = scmp.ne.s32.totalorder %s189, %s203
      %p205 = scmp.eq.s32.totalorder %s32, 0
      %p206 = por %p204, %p205
      %s208 = sadd.s32 %s207, 1
      %p211 = scmp.eq.s32.totalorder %s26, 1
      %p212 = scmp.ne.s32.totalorder %s207, %s209
      %p213 = scmp.eq.s32.totalorder %s26, 0
      %p214 = por %p212, %p213
      %p215 = scmp.ne.s32.totalorder %s207, %s209
      %p216 = scmp.eq.s32.totalorder %s31, 1
      %p217 = por %p215, %p216
      %p218 = scmp.ne.s32.totalorder %s209, %s210
      %p219 = scmp.eq.s32.totalorder %s31, 0
      %p220 = por %p218, %p219
      %p221 = scmp.ne.s32.totalorder %s209, %s210
      %p222 = scmp.eq.s32.totalorder %s32, 1
      %p223 = por %p221, %p222
      %p225 = scmp.ne.s32.totalorder %s210, %s224
      %p226 = scmp.eq.s32.totalorder %s32, 0
      %p227 = por %p225, %p226
      %s229 = sadd.s32 %s228, 1
      %p232 = scmp.eq.s32.totalorder %s26, 1
      %p233 = scmp.ne.s32.totalorder %s228, %s230
      %p234 = scmp.eq.s32.totalorder %s26, 0
      %p235 = por %p233, %p234
      %p236 = scmp.ne.s32.totalorder %s228, %s230
      %p237 = scmp.eq.s32.totalorder %s31, 1
      %p238 = por %p236, %p237
      %p239 = scmp.ne.s32.totalorder %s230, %s231
      %p240 = scmp.eq.s32.totalorder %s31, 0
      %p241 = por %p239, %p240
      %p242 = scmp.ne.s32.totalorder %s230, %s231
      %p243 = scmp.eq.s32.totalorder %s32, 1
      %p244 = por %p242, %p243
      %p246 = scmp.ne.s32.totalorder %s231, %s245
      %p247 = scmp.eq.s32.totalorder %s32, 0
      %p248 = por %p246, %p247
      %s250 = sadd.s32 %s249, 1
      %p253 = scmp.eq.s32.totalorder %s26, 1
      %p254 = scmp.ne.s32.totalorder %s249, %s251
      %p255 = scmp.eq.s32.totalorder %s26, 0
      %p256 = por %p254, %p255
      %p257 = scmp.ne.s32.totalorder %s249, %s251
      %p258 = scmp.eq.s32.totalorder %s31, 1
      %p259 = por %p257, %p258
      %p260 = scmp.ne.s32.totalorder %s251, %s252
      %p261 = scmp.eq.s32.totalorder %s31, 0
      %p262 = por %p260, %p261
      %p263 = scmp.ne.s32.totalorder %s251, %s252
      %p264 = scmp.eq.s32.totalorder %s32, 1
      %p265 = por %p263, %p264
      %p267 = scmp.ne.s32.totalorder %s252, %s266
      %p268 = scmp.eq.s32.totalorder %s32, 0
      %p269 = por %p267, %p268
      %s270 = ssub.s32 %s26, %s33
      %p271 = scmp.eq.s32.totalorder %s270, 0
      %s273 = sadd.s32 %s272, 1
      %s274 = scalar_select %p271, %s272, %s273
      %p277 = pneg %p271
      %p278 = scmp.eq.s32.totalorder %s26, 1
      %p279 = por %p277, %p278
      %p280 = scmp.ne.s32.totalorder %s272, %s275
      %p281 = scmp.eq.s32.totalorder %s26, 0
      %p282 = por %p280, %p281
      %p283 = scmp.ne.s32.totalorder %s272, %s275
      %p284 = scmp.eq.s32.totalorder %s31, 1
      %p285 = por %p283, %p284
      %p286 = scmp.ne.s32.totalorder %s275, %s276
      %p287 = scmp.eq.s32.totalorder %s31, 0
      %p288 = por %p286, %p287
      %p289 = scmp.ne.s32.totalorder %s275, %s276
      %p290 = scmp.eq.s32.totalorder %s32, 1
      %p291 = por %p289, %p290
      %p293 = scmp.ne.s32.totalorder %s276, %s292
      %p294 = scmp.eq.s32.totalorder %s32, 0
      %p295 = por %p293, %p294
      %p296 = scmp.le.s32.totalorder 1, %s26
      %p297 = scmp.lt.s32.totalorder %s26, 3
      %p298 = pnand %p296, %p297
      %p299 = pneg %p298
      // Predicated region
      $region9: #{tpu_custom_call.1} parent=5 // pred_check
        _
      $region10: #{tpu_custom_call.1} parent=5 // pred_check_branch
        %301 = sbr.rel (%p298) target = $region12
      $region11: #{tpu_custom_call.1} parent=5 // pred_region
        %s302 = ssub.s32 %s26, 1
        // Predicated region
        $region13: #{tpu_custom_call.1} parent=11 // pred_check
          %p303 = pneg %p73
        $region14: #{tpu_custom_call.1} parent=11 // pred_check_branch
          %305 = sbr.rel (%p303) target = $region16
        $region15: #{tpu_custom_call.1} parent=11 // pred_region
          %s307 = ssub.s32 25088, 25088
          %308 = vsyncadd [#allocation6], %s307
          %s309 = sshll.u32 [#allocation5], 4
          %s310 = int_to_ptr.vmem [resolvable:$true] %s309
          %315 = dma.hbm_to_vmem [thread:$0]  %s1, 25088, %s310, [#allocation6], 256, 256, 16
        $region16: #{tpu_custom_call.1} parent=11 // pred_fallthru
          _
        // Predicated region
        $region17: #{tpu_custom_call.1} parent=11 // pred_check
          %p316 = pneg %p94
        $region18: #{tpu_custom_call.1} parent=11 // pred_check_branch
          %318 = sbr.rel (%p316) target = $region20
        $region19: #{tpu_custom_call.1} parent=11 // pred_region
          _
        $region20: #{tpu_custom_call.1} parent=11 // pred_fallthru
          _
        // Predicated region
        $region21: #{tpu_custom_call.1} parent=11 // pred_check
          %p319 = pneg %p115
        $region22: #{tpu_custom_call.1} parent=11 // pred_check_branch
          %321 = sbr.rel (%p319) target = $region24
        $region23: #{tpu_custom_call.1} parent=11 // pred_region
          %s323 = ssub.s32 8192, 8192
          %324 = vsyncadd [#allocation6], %s323
          %s325 = sshll.u32 [#allocation7], 4
          %s326 = int_to_ptr.vmem [resolvable:$true] %s325
          %331 = dma.hbm_to_vmem [thread:$0]  %s3, 8192, %s326, [#allocation6], 128, 128, 8
        $region24: #{tpu_custom_call.1} parent=11 // pred_fallthru
          _
        // Predicated region
        $region25: #{tpu_custom_call.1} parent=11 // pred_check
          %p332 = pneg %p136
        $region26: #{tpu_custom_call.1} parent=11 // pred_check_branch
          %334 = sbr.rel (%p332) target = $region28
        $region27: #{tpu_custom_call.1} parent=11 // pred_region
          _
        $region28: #{tpu_custom_call.1} parent=11 // pred_fallthru
          _
        // Predicated region
        $region29: #{tpu_custom_call.1} parent=11 // pred_check
          %p335 = pneg %p157
        $region30: #{tpu_custom_call.1} parent=11 // pred_check_branch
          %337 = sbr.rel (%p335) target = $region32
        $region31: #{tpu_custom_call.1} parent=11 // pred_region
          %s339 = ssub.s32 2048, 2048
          %340 = vsyncadd [#allocation9], %s339
          %s341 = sshll.u32 [#allocation8], 4
          %s342 = int_to_ptr.vmem [resolvable:$true] %s341
          %347 = dma.hbm_to_vmem [thread:$0]  %s5, 2048, %s342, [#allocation9], 64, 64, 4
        $region32: #{tpu_custom_call.1} parent=11 // pred_fallthru
          _
        // Predicated region
        $region33: #{tpu_custom_call.1} parent=11 // pred_check
          %p348 = pneg %p178
        $region34: #{tpu_custom_call.1} parent=11 // pred_check_branch
          %350 = sbr.rel (%p348) target = $region36
        $region35: #{tpu_custom_call.1} parent=11 // pred_region
          _
        $region36: #{tpu_custom_call.1} parent=11 // pred_fallthru
          _
        // Predicated region
        $region37: #{tpu_custom_call.1} parent=11 // pred_check
          %p351 = pneg %p199
        $region38: #{tpu_custom_call.1} parent=11 // pred_check_branch
          %353 = sbr.rel (%p351) target = $region40
        $region39: #{tpu_custom_call.1} parent=11 // pred_region
          %s355 = ssub.s32 1024, 1024
          %356 = vsyncadd [#allocation9], %s355
          %s357 = sshll.u32 [#allocation10], 4
          %s358 = int_to_ptr.vmem [resolvable:$true] %s357
          %363 = dma.hbm_to_vmem [thread:$0]  %s7, 1024, %s358, [#allocation9], 64, 64, 4
        $region40: #{tpu_custom_call.1} parent=11 // pred_fallthru
          _
        // Predicated region
        $region41: #{tpu_custom_call.1} parent=11 // pred_check
          %p364 = pneg %p220
        $region42: #{tpu_custom_call.1} parent=11 // pred_check_branch
          %366 = sbr.rel (%p364) target = $region44
        $region43: #{tpu_custom_call.1} parent=11 // pred_region
          _
        $region44: #{tpu_custom_call.1} parent=11 // pred_fallthru
          _
        // Predicated region
        $region45: #{tpu_custom_call.1} parent=11 // pred_check
          %p367 = pneg %p241
        $region46: #{tpu_custom_call.1} parent=11 // pred_check_branch
          %369 = sbr.rel (%p367) target = $region48
        $region47: #{tpu_custom_call.1} parent=11 // pred_region
          %s371 = ssub.s32 1024, 1024
          %372 = vsyncadd [#allocation12], %s371
          %s373 = sshll.u32 [#allocation11], 4
          %s374 = int_to_ptr.vmem [resolvable:$true] %s373
          %379 = dma.hbm_to_vmem [thread:$0]  %s9, 1024, %s374, [#allocation12], 64, 64, 4
        $region48: #{tpu_custom_call.1} parent=11 // pred_fallthru
          _
        // Predicated region
        $region49: #{tpu_custom_call.1} parent=11 // pred_check
          %p380 = pneg %p262
        $region50: #{tpu_custom_call.1} parent=11 // pred_check_branch
          %382 = sbr.rel (%p380) target = $region52
        $region51: #{tpu_custom_call.1} parent=11 // pred_region
          _
        $region52: #{tpu_custom_call.1} parent=11 // pred_fallthru
          _
      $region12: #{tpu_custom_call.1} parent=5 // pred_fallthru
        _
      %p383 = scmp.lt.s32.totalorder %s26, 2
      // Predicated region
      $region53: #{tpu_custom_call.1} parent=5 // pred_check
        %p384 = pneg %p383
      $region54: #{tpu_custom_call.1} parent=5 // pred_check_branch
        %386 = sbr.rel (%p384) target = $region56
      $region55: #{tpu_custom_call.1} parent=5 // pred_region
        // Predicated region
        $region57: #{tpu_custom_call.1} parent=55 // pred_check
          %p387 = pneg %p46
        $region58: #{tpu_custom_call.1} parent=55 // pred_check_branch
          %389 = sbr.rel (%p387) target = $region60
        $region59: #{tpu_custom_call.1} parent=55 // pred_region
          %s390 = sand.u32 %s36, 1
          %s391 = scalar_lea.sflag [#allocation3], %s390
          %s392 = sand.u32 %s36, 1
          %s393 = smul.addr %s392, 112
          %s394 = scalar_lea.vmem [#allocation2], %s393
          %s395 = smul.u32 4, %s26
          %s397 = ssub.s32 1792, 1792
          %398 = vsyncadd %s391, %s397
          %s399 = smul.addr %s395, 7
          %s400 = smul.addr %s399, 64
          %s401 = scalar_lea.hbm %s0, %s400
          %s402 = sshll.u32 %s394, 4
          %s403 = int_to_ptr.vmem [resolvable:$true] %s402
          %408 = dma.hbm_to_vmem [thread:$0]  %s401, 1792, %s403, %s391, 448, 448, 28
        $region60: #{tpu_custom_call.1} parent=55 // pred_fallthru
          _
      $region56: #{tpu_custom_call.1} parent=5 // pred_fallthru
        _
      %p409 = scmp.le.s32.totalorder 1, %s26
      %p410 = scmp.lt.s32.totalorder %s26, 3
      %p411 = pnand %p409, %p410
      %p412 = pneg %p411
      // Predicated region
      $region61: #{tpu_custom_call.1} parent=5 // pred_check
        _
      $region62: #{tpu_custom_call.1} parent=5 // pred_check_branch
        %414 = sbr.rel (%p411) target = $region64
      $region63: #{tpu_custom_call.1} parent=5 // pred_region
        %s415 = ssub.s32 %s26, 1
        %s416 = sand.u32 %s39, 1
        %s417 = scalar_lea.sflag [#allocation3], %s416
        %s418 = sand.u32 %s39, 1
        %s419 = smul.addr %s418, 112
        %s420 = scalar_lea.vmem [#allocation2], %s419
        // Predicated region
        $region65: #{tpu_custom_call.1} parent=63 // pred_check
          %p421 = pneg %p52
        $region66: #{tpu_custom_call.1} parent=63 // pred_check_branch
          %423 = sbr.rel (%p421) target = $region68
        $region67: #{tpu_custom_call.1} parent=63 // pred_region
          %424 = dma.done %s417, 1792
        $region68: #{tpu_custom_call.1} parent=63 // pred_fallthru
          _
        // Predicated region
        $region69: #{tpu_custom_call.1} parent=63 // pred_check
          %p425 = pneg %p73
        $region70: #{tpu_custom_call.1} parent=63 // pred_check_branch
          %427 = sbr.rel (%p425) target = $region72
        $region71: #{tpu_custom_call.1} parent=63 // pred_region
          %428 = dma.done [#allocation6], 25088
        $region72: #{tpu_custom_call.1} parent=63 // pred_fallthru
          _
        // Predicated region
        $region73: #{tpu_custom_call.1} parent=63 // pred_check
          %p429 = pneg %p115
        $region74: #{tpu_custom_call.1} parent=63 // pred_check_branch
          %431 = sbr.rel (%p429) target = $region76
        $region75: #{tpu_custom_call.1} parent=63 // pred_region
          %432 = dma.done [#allocation6], 8192
        $region76: #{tpu_custom_call.1} parent=63 // pred_fallthru
          _
        // Predicated region
        $region77: #{tpu_custom_call.1} parent=63 // pred_check
          %p433 = pneg %p157
        $region78: #{tpu_custom_call.1} parent=63 // pred_check_branch
          %435 = sbr.rel (%p433) target = $region80
        $region79: #{tpu_custom_call.1} parent=63 // pred_region
          %436 = dma.done [#allocation9], 2048
        $region80: #{tpu_custom_call.1} parent=63 // pred_fallthru
          _
        // Predicated region
        $region81: #{tpu_custom_call.1} parent=63 // pred_check
          %p437 = pneg %p199
        $region82: #{tpu_custom_call.1} parent=63 // pred_check_branch
          %439 = sbr.rel (%p437) target = $region84
        $region83: #{tpu_custom_call.1} parent=63 // pred_region
          %440 = dma.done [#allocation9], 1024
        $region84: #{tpu_custom_call.1} parent=63 // pred_fallthru
          _
        // Predicated region
        $region85: #{tpu_custom_call.1} parent=63 // pred_check
          %p441 = pneg %p241
        $region86: #{tpu_custom_call.1} parent=63 // pred_check_branch
          %443 = sbr.rel (%p441) target = $region88
        $region87: #{tpu_custom_call.1} parent=63 // pred_region
          %444 = dma.done [#allocation12], 1024
        $region88: #{tpu_custom_call.1} parent=63 // pred_fallthru
          _
        %s445 = sand.u32 %s39, 1
        %s446 = scalar_lea.sflag [#allocation3], %s445
        %s447 = sand.u32 %s39, 1
        %s448 = smul.addr %s447, 112
        %s449 = scalar_lea.vmem [#allocation2], %s448
        %p450 = pneg %p52
        %p451 = pneg %p49
        %p452 = pneg %p73
        %p453 = pneg %p70
        %p454 = pneg %p94
        %p455 = pneg %p91
        %p456 = pneg %p115
        %p457 = pneg %p112
        %p458 = pneg %p136
        %p459 = pneg %p133
        %p460 = pneg %p157
        %p461 = pneg %p154
        %p462 = pneg %p178
        %p463 = pneg %p175
        %p464 = pneg %p199
        %p465 = pneg %p196
        %p466 = pneg %p220
        %p467 = pneg %p217
        %p468 = pneg %p241
        %p469 = pneg %p238
        %p470 = pneg %p262
        %p471 = pneg %p259
        %p472 = pneg %p288
        %p473 = pneg %p285
        %s474 = sand.u32 %s275, 1
        %s475 = scalar_lea.sflag [#allocation4], %s474
        %s476 = sand.u32 %s275, 1
        %s477 = smul.addr %s476, 32
        %s478 = scalar_lea.vmem [#allocation13], %s477
        %s479 = smul.u32 4, %s31
        %s480 = smul.u32 4, %s31
        %v482 = vld [vmem:[%s420] sm:$0xff]
        %v483 = vld [vmem:[%s420 + $0x8] sm:$0xff]
        %v484 = vld [vmem:[%s420 + $0x10] sm:$0xff]
        %v485 = vld [vmem:[%s420 + $0x18] sm:$0xf]
        %v486 = vld [vmem:[%s420 + $0x1c] sm:$0xff]
        %v487 = vld [vmem:[%s420 + $0x24] sm:$0xff]
        %v488 = vld [vmem:[%s420 + $0x2c] sm:$0xff]
        %v489 = vld [vmem:[%s420 + $0x34] sm:$0xf]
        %v490 = vld [vmem:[%s420 + $0x38] sm:$0xff]
        %v491 = vld [vmem:[%s420 + $0x40] sm:$0xff]
        %v492 = vld [vmem:[%s420 + $0x48] sm:$0xff]
        %v493 = vld [vmem:[%s420 + $0x50] sm:$0xf]
        %v494 = vld [vmem:[%s420 + $0x54] sm:$0xff]
        %v495 = vld [vmem:[%s420 + $0x5c] sm:$0xff]
        %v496 = vld [vmem:[%s420 + $0x64] sm:$0xff]
        %v497 = vld [vmem:[%s420 + $0x6c] sm:$0xf]
        %v498 = vld [vmem:[#allocation5] sm:$0xff]
        %v499 = vld [vmem:[#allocation5 + $0x8] sm:$0xff]
        %v500 = vld [vmem:[#allocation5 + $0x10] sm:$0xff]
        %v501 = vld [vmem:[#allocation5 + $0x18] sm:$0xff]
        %v502 = vld [vmem:[#allocation5 + $0x20] sm:$0xff]
        %v503 = vld [vmem:[#allocation5 + $0x28] sm:$0xff]
        %v504 = vld [vmem:[#allocation5 + $0x30] sm:$0xff]
        %v505 = vld [vmem:[#allocation5 + $0x38] sm:$0xff]
        %v506 = vld [vmem:[#allocation5 + $0x40] sm:$0xff]
        %v507 = vld [vmem:[#allocation5 + $0x48] sm:$0xff]
        %v508 = vld [vmem:[#allocation5 + $0x50] sm:$0xff]
        %v509 = vld [vmem:[#allocation5 + $0x58] sm:$0xff]
        %v510 = vld [vmem:[#allocation5 + $0x60] sm:$0xff]
        %v511 = vld [vmem:[#allocation5 + $0x68] sm:$0xff]
        %v512 = vld [vmem:[#allocation5 + $0x70] sm:$0xff]
        %v513 = vld [vmem:[#allocation5 + $0x78] sm:$0xff]
        %v514 = vld [vmem:[#allocation5 + $0x80] sm:$0xff]
        %v515 = vld [vmem:[#allocation5 + $0x88] sm:$0xff]
        %v516 = vld [vmem:[#allocation5 + $0x90] sm:$0xff]
        %v517 = vld [vmem:[#allocation5 + $0x98] sm:$0xff]
        %v518 = vld [vmem:[#allocation5 + $0xa0] sm:$0xff]
        %v519 = vld [vmem:[#allocation5 + $0xa8] sm:$0xff]
        %v520 = vld [vmem:[#allocation5 + $0xb0] sm:$0xff]
        %v521 = vld [vmem:[#allocation5 + $0xb8] sm:$0xff]
        %v522 = vld [vmem:[#allocation5 + $0xc0] sm:$0xff]
        %v523 = vld [vmem:[#allocation5 + $0xc8] sm:$0xff]
        %v524 = vld [vmem:[#allocation5 + $0xd0] sm:$0xff]
        %v525 = vld [vmem:[#allocation5 + $0xd8] sm:$0xff]
        %v526 = vld [vmem:[#allocation5 + $0xe0] sm:$0xff]
        %v527 = vld [vmem:[#allocation5 + $0xe8] sm:$0xff]
        %v528 = vld [vmem:[#allocation5 + $0xf0] sm:$0xff]
        %v529 = vld [vmem:[#allocation5 + $0xf8] sm:$0xff]
        %v530 = vld [vmem:[#allocation5 + $0x100] sm:$0xff]
        %v531 = vld [vmem:[#allocation5 + $0x108] sm:$0xff]
        %v532 = vld [vmem:[#allocation5 + $0x110] sm:$0xff]
        %v533 = vld [vmem:[#allocation5 + $0x118] sm:$0xff]
        %v534 = vld [vmem:[#allocation5 + $0x120] sm:$0xff]
        %v535 = vld [vmem:[#allocation5 + $0x128] sm:$0xff]
        %v536 = vld [vmem:[#allocation5 + $0x130] sm:$0xff]
        %v537 = vld [vmem:[#allocation5 + $0x138] sm:$0xff]
        %v538 = vld [vmem:[#allocation5 + $0x140] sm:$0xff]
        %v539 = vld [vmem:[#allocation5 + $0x148] sm:$0xff]
        %v540 = vld [vmem:[#allocation5 + $0x150] sm:$0xff]
        %v541 = vld [vmem:[#allocation5 + $0x158] sm:$0xff]
        %v542 = vld [vmem:[#allocation5 + $0x160] sm:$0xff]
        %v543 = vld [vmem:[#allocation5 + $0x168] sm:$0xff]
        %v544 = vld [vmem:[#allocation5 + $0x170] sm:$0xff]
        %v545 = vld [vmem:[#allocation5 + $0x178] sm:$0xff]
        %v546 = vld [vmem:[#allocation5 + $0x180] sm:$0xff]
        %v547 = vld [vmem:[#allocation5 + $0x188] sm:$0xff]
        %v548 = vld [vmem:[#allocation5 + $0x190] sm:$0xff]
        %v549 = vld [vmem:[#allocation5 + $0x198] sm:$0xff]
        %v550 = vld [vmem:[#allocation5 + $0x1a0] sm:$0xff]
        %v551 = vld [vmem:[#allocation5 + $0x1a8] sm:$0xff]
        %v552 = vld [vmem:[#allocation5 + $0x1b0] sm:$0xff]
        %v553 = vld [vmem:[#allocation5 + $0x1b8] sm:$0xff]
        %v554 = vld [vmem:[#allocation5 + $0x1c0] sm:$0xff]
        %v555 = vld [vmem:[#allocation5 + $0x1c8] sm:$0xff]
        %v556 = vld [vmem:[#allocation5 + $0x1d0] sm:$0xff]
        %v557 = vld [vmem:[#allocation5 + $0x1d8] sm:$0xff]
        %v558 = vld [vmem:[#allocation5 + $0x1e0] sm:$0xff]
        %v559 = vld [vmem:[#allocation5 + $0x1e8] sm:$0xff]
        %v560 = vld [vmem:[#allocation5 + $0x1f0] sm:$0xff]
        %v561 = vld [vmem:[#allocation5 + $0x1f8] sm:$0xff]
        %v562 = vld [vmem:[#allocation5 + $0x200] sm:$0xff]
        %v563 = vld [vmem:[#allocation5 + $0x208] sm:$0xff]
        %v564 = vld [vmem:[#allocation5 + $0x210] sm:$0xff]
        %v565 = vld [vmem:[#allocation5 + $0x218] sm:$0xff]
        %v566 = vld [vmem:[#allocation5 + $0x220] sm:$0xff]
        %v567 = vld [vmem:[#allocation5 + $0x228] sm:$0xff]
        %v568 = vld [vmem:[#allocation5 + $0x230] sm:$0xff]
        %v569 = vld [vmem:[#allocation5 + $0x238] sm:$0xff]
        %v570 = vld [vmem:[#allocation5 + $0x240] sm:$0xff]
        %v571 = vld [vmem:[#allocation5 + $0x248] sm:$0xff]
        %v572 = vld [vmem:[#allocation5 + $0x250] sm:$0xff]
        %v573 = vld [vmem:[#allocation5 + $0x258] sm:$0xff]
        %v574 = vld [vmem:[#allocation5 + $0x260] sm:$0xff]
        %v575 = vld [vmem:[#allocation5 + $0x268] sm:$0xff]
        %v576 = vld [vmem:[#allocation5 + $0x270] sm:$0xff]
        %v577 = vld [vmem:[#allocation5 + $0x278] sm:$0xff]
        %v578 = vld [vmem:[#allocation5 + $0x280] sm:$0xff]
        %v579 = vld [vmem:[#allocation5 + $0x288] sm:$0xff]
        %v580 = vld [vmem:[#allocation5 + $0x290] sm:$0xff]
        %v581 = vld [vmem:[#allocation5 + $0x298] sm:$0xff]
        %v582 = vld [vmem:[#allocation5 + $0x2a0] sm:$0xff]
        %v583 = vld [vmem:[#allocation5 + $0x2a8] sm:$0xff]
        %v584 = vld [vmem:[#allocation5 + $0x2b0] sm:$0xff]
        %v585 = vld [vmem:[#allocation5 + $0x2b8] sm:$0xff]
        %v586 = vld [vmem:[#allocation5 + $0x2c0] sm:$0xff]
        %v587 = vld [vmem:[#allocation5 + $0x2c8] sm:$0xff]
        %v588 = vld [vmem:[#allocation5 + $0x2d0] sm:$0xff]
        %v589 = vld [vmem:[#allocation5 + $0x2d8] sm:$0xff]
        %v590 = vld [vmem:[#allocation5 + $0x2e0] sm:$0xff]
        %v591 = vld [vmem:[#allocation5 + $0x2e8] sm:$0xff]
        %v592 = vld [vmem:[#allocation5 + $0x2f0] sm:$0xff]
        %v593 = vld [vmem:[#allocation5 + $0x2f8] sm:$0xff]
        %v594 = vld [vmem:[#allocation5 + $0x300] sm:$0xff]
        %v595 = vld [vmem:[#allocation5 + $0x308] sm:$0xff]
        %v596 = vld [vmem:[#allocation5 + $0x310] sm:$0xff]
        %v597 = vld [vmem:[#allocation5 + $0x318] sm:$0xff]
        %v598 = vld [vmem:[#allocation5 + $0x320] sm:$0xff]
        %v599 = vld [vmem:[#allocation5 + $0x328] sm:$0xff]
        %v600 = vld [vmem:[#allocation5 + $0x330] sm:$0xff]
        %v601 = vld [vmem:[#allocation5 + $0x338] sm:$0xff]
        %v602 = vld [vmem:[#allocation5 + $0x340] sm:$0xff]
        %v603 = vld [vmem:[#allocation5 + $0x348] sm:$0xff]
        %v604 = vld [vmem:[#allocation5 + $0x350] sm:$0xff]
        %v605 = vld [vmem:[#allocation5 + $0x358] sm:$0xff]
        %v606 = vld [vmem:[#allocation5 + $0x360] sm:$0xff]
        %v607 = vld [vmem:[#allocation5 + $0x368] sm:$0xff]
        %v608 = vld [vmem:[#allocation5 + $0x370] sm:$0xff]
        %v609 = vld [vmem:[#allocation5 + $0x378] sm:$0xff]
        %v610 = vld [vmem:[#allocation5 + $0x380] sm:$0xff]
        %v611 = vld [vmem:[#allocation5 + $0x388] sm:$0xff]
        %v612 = vld [vmem:[#allocation5 + $0x390] sm:$0xff]
        %v613 = vld [vmem:[#allocation5 + $0x398] sm:$0xff]
        %v614 = vld [vmem:[#allocation5 + $0x3a0] sm:$0xff]
        %v615 = vld [vmem:[#allocation5 + $0x3a8] sm:$0xff]
        %v616 = vld [vmem:[#allocation5 + $0x3b0] sm:$0xff]
        %v617 = vld [vmem:[#allocation5 + $0x3b8] sm:$0xff]
        %v618 = vld [vmem:[#allocation5 + $0x3c0] sm:$0xff]
        %v619 = vld [vmem:[#allocation5 + $0x3c8] sm:$0xff]
        %v620 = vld [vmem:[#allocation5 + $0x3d0] sm:$0xff]
        %v621 = vld [vmem:[#allocation5 + $0x3d8] sm:$0xff]
        %v622 = vld [vmem:[#allocation5 + $0x3e0] sm:$0xff]
        %v623 = vld [vmem:[#allocation5 + $0x3e8] sm:$0xff]
        %v624 = vld [vmem:[#allocation5 + $0x3f0] sm:$0xff]
        %v625 = vld [vmem:[#allocation5 + $0x3f8] sm:$0xff]
        %v626 = vld [vmem:[#allocation5 + $0x400] sm:$0xff]
        %v627 = vld [vmem:[#allocation5 + $0x408] sm:$0xff]
        %v628 = vld [vmem:[#allocation5 + $0x410] sm:$0xff]
        %v629 = vld [vmem:[#allocation5 + $0x418] sm:$0xff]
        %v630 = vld [vmem:[#allocation5 + $0x420] sm:$0xff]
        %v631 = vld [vmem:[#allocation5 + $0x428] sm:$0xff]
        %v632 = vld [vmem:[#allocation5 + $0x430] sm:$0xff]
        %v633 = vld [vmem:[#allocation5 + $0x438] sm:$0xff]
        %v634 = vld [vmem:[#allocation5 + $0x440] sm:$0xff]
        %v635 = vld [vmem:[#allocation5 + $0x448] sm:$0xff]
        %v636 = vld [vmem:[#allocation5 + $0x450] sm:$0xff]
        %v637 = vld [vmem:[#allocation5 + $0x458] sm:$0xff]
        %v638 = vld [vmem:[#allocation5 + $0x460] sm:$0xff]
        %v639 = vld [vmem:[#allocation5 + $0x468] sm:$0xff]
        %v640 = vld [vmem:[#allocation5 + $0x470] sm:$0xff]
        %v641 = vld [vmem:[#allocation5 + $0x478] sm:$0xff]
        %v642 = vld [vmem:[#allocation5 + $0x480] sm:$0xff]
        %v643 = vld [vmem:[#allocation5 + $0x488] sm:$0xff]
        %v644 = vld [vmem:[#allocation5 + $0x490] sm:$0xff]
        %v645 = vld [vmem:[#allocation5 + $0x498] sm:$0xff]
        %v646 = vld [vmem:[#allocation5 + $0x4a0] sm:$0xff]
        %v647 = vld [vmem:[#allocation5 + $0x4a8] sm:$0xff]
        %v648 = vld [vmem:[#allocation5 + $0x4b0] sm:$0xff]
        %v649 = vld [vmem:[#allocation5 + $0x4b8] sm:$0xff]
        %v650 = vld [vmem:[#allocation5 + $0x4c0] sm:$0xff]
        %v651 = vld [vmem:[#allocation5 + $0x4c8] sm:$0xff]
        %v652 = vld [vmem:[#allocation5 + $0x4d0] sm:$0xff]
        %v653 = vld [vmem:[#allocation5 + $0x4d8] sm:$0xff]
        %v654 = vld [vmem:[#allocation5 + $0x4e0] sm:$0xff]
        %v655 = vld [vmem:[#allocation5 + $0x4e8] sm:$0xff]
        %v656 = vld [vmem:[#allocation5 + $0x4f0] sm:$0xff]
        %v657 = vld [vmem:[#allocation5 + $0x4f8] sm:$0xff]
        %v658 = vld [vmem:[#allocation5 + $0x500] sm:$0xff]
        %v659 = vld [vmem:[#allocation5 + $0x508] sm:$0xff]
        %v660 = vld [vmem:[#allocation5 + $0x510] sm:$0xff]
        %v661 = vld [vmem:[#allocation5 + $0x518] sm:$0xff]
        %v662 = vld [vmem:[#allocation5 + $0x520] sm:$0xff]
        %v663 = vld [vmem:[#allocation5 + $0x528] sm:$0xff]
        %v664 = vld [vmem:[#allocation5 + $0x530] sm:$0xff]
        %v665 = vld [vmem:[#allocation5 + $0x538] sm:$0xff]
        %v666 = vld [vmem:[#allocation5 + $0x540] sm:$0xff]
        %v667 = vld [vmem:[#allocation5 + $0x548] sm:$0xff]
        %v668 = vld [vmem:[#allocation5 + $0x550] sm:$0xff]
        %v669 = vld [vmem:[#allocation5 + $0x558] sm:$0xff]
        %v670 = vld [vmem:[#allocation5 + $0x560] sm:$0xff]
        %v671 = vld [vmem:[#allocation5 + $0x568] sm:$0xff]
        %v672 = vld [vmem:[#allocation5 + $0x570] sm:$0xff]
        %v673 = vld [vmem:[#allocation5 + $0x578] sm:$0xff]
        %v674 = vld [vmem:[#allocation5 + $0x580] sm:$0xff]
        %v675 = vld [vmem:[#allocation5 + $0x588] sm:$0xff]
        %v676 = vld [vmem:[#allocation5 + $0x590] sm:$0xff]
        %v677 = vld [vmem:[#allocation5 + $0x598] sm:$0xff]
        %v678 = vld [vmem:[#allocation5 + $0x5a0] sm:$0xff]
        %v679 = vld [vmem:[#allocation5 + $0x5a8] sm:$0xff]
        %v680 = vld [vmem:[#allocation5 + $0x5b0] sm:$0xff]
        %v681 = vld [vmem:[#allocation5 + $0x5b8] sm:$0xff]
        %v682 = vld [vmem:[#allocation5 + $0x5c0] sm:$0xff]
        %v683 = vld [vmem:[#allocation5 + $0x5c8] sm:$0xff]
        %v684 = vld [vmem:[#allocation5 + $0x5d0] sm:$0xff]
        %v685 = vld [vmem:[#allocation5 + $0x5d8] sm:$0xff]
        %v686 = vld [vmem:[#allocation5 + $0x5e0] sm:$0xff]
        %v687 = vld [vmem:[#allocation5 + $0x5e8] sm:$0xff]
        %v688 = vld [vmem:[#allocation5 + $0x5f0] sm:$0xff]
        %v689 = vld [vmem:[#allocation5 + $0x5f8] sm:$0xff]
        %v690 = vld [vmem:[#allocation5 + $0x600] sm:$0xff]
        %v691 = vld [vmem:[#allocation5 + $0x608] sm:$0xff]
        %v692 = vld [vmem:[#allocation5 + $0x610] sm:$0xff]
        %v693 = vld [vmem:[#allocation5 + $0x618] sm:$0xff]
        %v694 = vld [vmem:[%s2] sm:$0xf]
        %v696 = vlaneseq
        %v697 = vshrl.u32 %v696, 7
        %v698 = vsub.s32 0, %v697
        %v699 = vrot.slane %v694, %v698
        %v700 = vlaneseq
        %v701 = vshrl.u32 %v700, 7
        %v702 = vsub.s32 1, %v701
        %v703 = vrot.slane %v694, %v702
        %v704 = vlaneseq
        %v705 = vshrl.u32 %v704, 7
        %v706 = vsub.s32 2, %v705
        %v707 = vrot.slane %v694, %v706
        %v708 = vlaneseq
        %v709 = vshrl.u32 %v708, 7
        %v710 = vsub.s32 3, %v709
        %v711 = vrot.slane %v694, %v710
        %v732 = vunpack.c.l.b16 %v482
        %v733 = vunpack.c.h.b16 %v482
        %v734 = vunpack.c.l.b16 %v483
        %v735 = vunpack.c.h.b16 %v483
        %v736 = vunpack.c.l.b16 %v484
        %v737 = vunpack.c.h.b16 %v484
        %v738 = vunpack.c.l.b16 %v485
        %v739 = vunpack.c.l.b16 %v486
        %v740 = vunpack.c.h.b16 %v486
        %v741 = vunpack.c.l.b16 %v487
        %v742 = vunpack.c.h.b16 %v487
        %v743 = vunpack.c.l.b16 %v488
        %v744 = vunpack.c.h.b16 %v488
        %v745 = vunpack.c.l.b16 %v489
        %v746 = vunpack.c.l.b16 %v490
        %v747 = vunpack.c.h.b16 %v490
        %v748 = vunpack.c.l.b16 %v491
        %v749 = vunpack.c.h.b16 %v491
        %v750 = vunpack.c.l.b16 %v492
        %v751 = vunpack.c.h.b16 %v492
        %v752 = vunpack.c.l.b16 %v493
        %v753 = vunpack.c.l.b16 %v494
        %v754 = vunpack.c.h.b16 %v494
        %v755 = vunpack.c.l.b16 %v495
        %v756 = vunpack.c.h.b16 %v495
        %v757 = vunpack.c.l.b16 %v496
        %v758 = vunpack.c.h.b16 %v496
        %v759 = vunpack.c.l.b16 %v497
        %v760 = vpack.c.b16 %v739, %v732
        %v761 = vpack.c.b16 %v740, %v733
        %v762 = vpack.c.b16 %v741, %v734
        %v763 = vpack.c.b16 %v742, %v735
        %v764 = vpack.c.b16 %v743, %v736
        %v765 = vpack.c.b16 %v744, %v737
        %v766 = vpack.c.b16 %v745, %v738
        %v767 = vpack.c.b16 %v753, %v746
        %v768 = vpack.c.b16 %v754, %v747
        %v769 = vpack.c.b16 %v755, %v748
        %v770 = vpack.c.b16 %v756, %v749
        %v771 = vpack.c.b16 %v757, %v750
        %v772 = vpack.c.b16 %v758, %v751
        %v773 = vpack.c.b16 %v759, %v752
        %v982 = vunpack.c.l.b16 %v498
        %v983 = vunpack.c.h.b16 %v498
        %v984 = vunpack.c.l.b16 %v499
        %v985 = vunpack.c.h.b16 %v499
        %v986 = vunpack.c.l.b16 %v500
        %v987 = vunpack.c.h.b16 %v500
        %v988 = vunpack.c.l.b16 %v501
        %v989 = vunpack.c.h.b16 %v501
        %v990 = vunpack.c.l.b16 %v502
        %v991 = vunpack.c.h.b16 %v502
        %v992 = vunpack.c.l.b16 %v503
        %v993 = vunpack.c.h.b16 %v503
        %v994 = vunpack.c.l.b16 %v504
        %v995 = vunpack.c.h.b16 %v504
        %v996 = vunpack.c.l.b16 %v505
        %v997 = vunpack.c.h.b16 %v505
        %v998 = vunpack.c.l.b16 %v506
        %v999 = vunpack.c.h.b16 %v506
        %v1000 = vunpack.c.l.b16 %v507
        %v1001 = vunpack.c.h.b16 %v507
        %v1002 = vunpack.c.l.b16 %v508
        %v1003 = vunpack.c.h.b16 %v508
        %v1004 = vunpack.c.l.b16 %v509
        %v1005 = vunpack.c.h.b16 %v509
        %v1006 = vunpack.c.l.b16 %v510
        %v1007 = vunpack.c.h.b16 %v510
        %v1008 = vunpack.c.l.b16 %v511
        %v1009 = vunpack.c.h.b16 %v511
        %v1010 = vunpack.c.l.b16 %v512
        %v1011 = vunpack.c.h.b16 %v512
        %v1012 = vunpack.c.l.b16 %v513
        %v1013 = vunpack.c.h.b16 %v513
        %v1014 = vunpack.c.l.b16 %v514
        %v1015 = vunpack.c.h.b16 %v514
        %v1016 = vunpack.c.l.b16 %v515
        %v1017 = vunpack.c.h.b16 %v515
        %v1018 = vunpack.c.l.b16 %v516
        %v1019 = vunpack.c.h.b16 %v516
        %v1020 = vunpack.c.l.b16 %v517
        %v1021 = vunpack.c.h.b16 %v517
        %v1022 = vunpack.c.l.b16 %v518
        %v1023 = vunpack.c.h.b16 %v518
        %v1024 = vunpack.c.l.b16 %v519
        %v1025 = vunpack.c.h.b16 %v519
        %v1026 = vunpack.c.l.b16 %v520
        %v1027 = vunpack.c.h.b16 %v520
        %v1028 = vunpack.c.l.b16 %v521
        %v1029 = vunpack.c.h.b16 %v521
        %v1030 = vunpack.c.l.b16 %v522
        %v1031 = vunpack.c.h.b16 %v522
        %v1032 = vunpack.c.l.b16 %v523
        %v1033 = vunpack.c.h.b16 %v523
        %v1034 = vunpack.c.l.b16 %v524
        %v1035 = vunpack.c.h.b16 %v524
        %v1036 = vunpack.c.l.b16 %v525
        %v1037 = vunpack.c.h.b16 %v525
        %v1038 = vunpack.c.l.b16 %v526
        %v1039 = vunpack.c.h.b16 %v526
        %v1040 = vunpack.c.l.b16 %v527
        %v1041 = vunpack.c.h.b16 %v527
        %v1042 = vunpack.c.l.b16 %v528
        %v1043 = vunpack.c.h.b16 %v528
        %v1044 = vunpack.c.l.b16 %v529
        %v1045 = vunpack.c.h.b16 %v529
        %v1046 = vunpack.c.l.b16 %v530
        %v1047 = vunpack.c.h.b16 %v530
        %v1048 = vunpack.c.l.b16 %v531
        %v1049 = vunpack.c.h.b16 %v531
        %v1050 = vunpack.c.l.b16 %v532
        %v1051 = vunpack.c.h.b16 %v532
        %v1052 = vunpack.c.l.b16 %v533
        %v1053 = vunpack.c.h.b16 %v533
        %v1054 = vunpack.c.l.b16 %v534
        %v1055 = vunpack.c.h.b16 %v534
        %v1056 = vunpack.c.l.b16 %v535
        %v1057 = vunpack.c.h.b16 %v535
        %v1058 = vunpack.c.l.b16 %v536
        %v1059 = vunpack.c.h.b16 %v536
        %v1060 = vunpack.c.l.b16 %v537
        %v1061 = vunpack.c.h.b16 %v537
        %v1062 = vunpack.c.l.b16 %v538
        %v1063 = vunpack.c.h.b16 %v538
        %v1064 = vunpack.c.l.b16 %v539
        %v1065 = vunpack.c.h.b16 %v539
        %v1066 = vunpack.c.l.b16 %v540
        %v1067 = vunpack.c.h.b16 %v540
        %v1068 = vunpack.c.l.b16 %v541
        %v1069 = vunpack.c.h.b16 %v541
        %v1070 = vunpack.c.l.b16 %v542
        %v1071 = vunpack.c.h.b16 %v542
        %v1072 = vunpack.c.l.b16 %v543
        %v1073 = vunpack.c.h.b16 %v543
        %v1074 = vunpack.c.l.b16 %v544
        %v1075 = vunpack.c.h.b16 %v544
        %v1076 = vunpack.c.l.b16 %v545
        %v1077 = vunpack.c.h.b16 %v545
        %v1078 = vunpack.c.l.b16 %v546
        %v1079 = vunpack.c.h.b16 %v546
        %v1080 = vunpack.c.l.b16 %v547
        %v1081 = vunpack.c.h.b16 %v547
        %v1082 = vunpack.c.l.b16 %v548
        %v1083 = vunpack.c.h.b16 %v548
        %v1084 = vunpack.c.l.b16 %v549
        %v1085 = vunpack.c.h.b16 %v549
        %v1086 = vunpack.c.l.b16 %v550
        %v1087 = vunpack.c.h.b16 %v550
        %v1088 = vunpack.c.l.b16 %v551
        %v1089 = vunpack.c.h.b16 %v551
        %v1090 = vunpack.c.l.b16 %v552
        %v1091 = vunpack.c.h.b16 %v552
        %v1092 = vunpack.c.l.b16 %v553
        %v1093 = vunpack.c.h.b16 %v553
        %v1094 = vunpack.c.l.b16 %v554
        %v1095 = vunpack.c.h.b16 %v554
        %v1096 = vunpack.c.l.b16 %v555
        %v1097 = vunpack.c.h.b16 %v555
        %v1098 = vunpack.c.l.b16 %v556
        %v1099 = vunpack.c.h.b16 %v556
        %v1100 = vunpack.c.l.b16 %v557
        %v1101 = vunpack.c.h.b16 %v557
        %v1102 = vunpack.c.l.b16 %v558
        %v1103 = vunpack.c.h.b16 %v558
        %v1104 = vunpack.c.l.b16 %v559
        %v1105 = vunpack.c.h.b16 %v559
        %v1106 = vunpack.c.l.b16 %v560
        %v1107 = vunpack.c.h.b16 %v560
        %v1108 = vunpack.c.l.b16 %v561
        %v1109 = vunpack.c.h.b16 %v561
        %v1110 = vunpack.c.l.b16 %v562
        %v1111 = vunpack.c.h.b16 %v562
        %v1112 = vunpack.c.l.b16 %v563
        %v1113 = vunpack.c.h.b16 %v563
        %v1114 = vunpack.c.l.b16 %v564
        %v1115 = vunpack.c.h.b16 %v564
        %v1116 = vunpack.c.l.b16 %v565
        %v1117 = vunpack.c.h.b16 %v565
        %v1118 = vunpack.c.l.b16 %v566
        %v1119 = vunpack.c.h.b16 %v566
        %v1120 = vunpack.c.l.b16 %v567
        %v1121 = vunpack.c.h.b16 %v567
        %v1122 = vunpack.c.l.b16 %v568
        %v1123 = vunpack.c.h.b16 %v568
        %v1124 = vunpack.c.l.b16 %v569
        %v1125 = vunpack.c.h.b16 %v569
        %v1126 = vunpack.c.l.b16 %v570
        %v1127 = vunpack.c.h.b16 %v570
        %v1128 = vunpack.c.l.b16 %v571
        %v1129 = vunpack.c.h.b16 %v571
        %v1130 = vunpack.c.l.b16 %v572
        %v1131 = vunpack.c.h.b16 %v572
        %v1132 = vunpack.c.l.b16 %v573
        %v1133 = vunpack.c.h.b16 %v573
        %v1134 = vunpack.c.l.b16 %v574
        %v1135 = vunpack.c.h.b16 %v574
        %v1136 = vunpack.c.l.b16 %v575
        %v1137 = vunpack.c.h.b16 %v575
        %v1138 = vunpack.c.l.b16 %v576
        %v1139 = vunpack.c.h.b16 %v576
        %v1140 = vunpack.c.l.b16 %v577
        %v1141 = vunpack.c.h.b16 %v577
        %v1142 = vunpack.c.l.b16 %v578
        %v1143 = vunpack.c.h.b16 %v578
        %v1144 = vunpack.c.l.b16 %v579
        %v1145 = vunpack.c.h.b16 %v579
        %v1146 = vunpack.c.l.b16 %v580
        %v1147 = vunpack.c.h.b16 %v580
        %v1148 = vunpack.c.l.b16 %v581
        %v1149 = vunpack.c.h.b16 %v581
        %v1150 = vunpack.c.l.b16 %v582
        %v1151 = vunpack.c.h.b16 %v582
        %v1152 = vunpack.c.l.b16 %v583
        %v1153 = vunpack.c.h.b16 %v583
        %v1154 = vunpack.c.l.b16 %v584
        %v1155 = vunpack.c.h.b16 %v584
        %v1156 = vunpack.c.l.b16 %v585
        %v1157 = vunpack.c.h.b16 %v585
        %v1158 = vunpack.c.l.b16 %v586
        %v1159 = vunpack.c.h.b16 %v586
        %v1160 = vunpack.c.l.b16 %v587
        %v1161 = vunpack.c.h.b16 %v587
        %v1162 = vunpack.c.l.b16 %v588
        %v1163 = vunpack.c.h.b16 %v588
        %v1164 = vunpack.c.l.b16 %v589
        %v1165 = vunpack.c.h.b16 %v589
        %v1166 = vunpack.c.l.b16 %v590
        %v1167 = vunpack.c.h.b16 %v590
        %v1168 = vunpack.c.l.b16 %v591
        %v1169 = vunpack.c.h.b16 %v591
        %v1170 = vunpack.c.l.b16 %v592
        %v1171 = vunpack.c.h.b16 %v592
        %v1172 = vunpack.c.l.b16 %v593
        %v1173 = vunpack.c.h.b16 %v593
        %v1174 = vunpack.c.l.b16 %v594
        %v1175 = vunpack.c.h.b16 %v594
        %v1176 = vunpack.c.l.b16 %v595
        %v1177 = vunpack.c.h.b16 %v595
        %v1178 = vunpack.c.l.b16 %v596
        %v1179 = vunpack.c.h.b16 %v596
        %v1180 = vunpack.c.l.b16 %v597
        %v1181 = vunpack.c.h.b16 %v597
        %v1182 = vunpack.c.l.b16 %v598
        %v1183 = vunpack.c.h.b16 %v598
        %v1184 = vunpack.c.l.b16 %v599
        %v1185 = vunpack.c.h.b16 %v599
        %v1186 = vunpack.c.l.b16 %v600
        %v1187 = vunpack.c.h.b16 %v600
        %v1188 = vunpack.c.l.b16 %v601
        %v1189 = vunpack.c.h.b16 %v601
        %v1190 = vunpack.c.l.b16 %v602
        %v1191 = vunpack.c.h.b16 %v602
        %v1192 = vunpack.c.l.b16 %v603
        %v1193 = vunpack.c.h.b16 %v603
        %v1194 = vunpack.c.l.b16 %v604
        %v1195 = vunpack.c.h.b16 %v604
        %v1196 = vunpack.c.l.b16 %v605
        %v1197 = vunpack.c.h.b16 %v605
        %v1198 = vunpack.c.l.b16 %v606
        %v1199 = vunpack.c.h.b16 %v606
        %v1200 = vunpack.c.l.b16 %v607
        %v1201 = vunpack.c.h.b16 %v607
        %v1202 = vunpack.c.l.b16 %v608
        %v1203 = vunpack.c.h.b16 %v608
        %v1204 = vunpack.c.l.b16 %v609
        %v1205 = vunpack.c.h.b16 %v609
        %v1206 = vunpack.c.l.b16 %v610
        %v1207 = vunpack.c.h.b16 %v610
        %v1208 = vunpack.c.l.b16 %v611
        %v1209 = vunpack.c.h.b16 %v611
        %v1210 = vunpack.c.l.b16 %v612
        %v1211 = vunpack.c.h.b16 %v612
        %v1212 = vunpack.c.l.b16 %v613
        %v1213 = vunpack.c.h.b16 %v613
        %v1214 = vunpack.c.l.b16 %v614
        %v1215 = vunpack.c.h.b16 %v614
        %v1216 = vunpack.c.l.b16 %v615
        %v1217 = vunpack.c.h.b16 %v615
        %v1218 = vunpack.c.l.b16 %v616
        %v1219 = vunpack.c.h.b16 %v616
        %v1220 = vunpack.c.l.b16 %v617
        %v1221 = vunpack.c.h.b16 %v617
        %v1222 = vunpack.c.l.b16 %v618
        %v1223 = vunpack.c.h.b16 %v618
        %v1224 = vunpack.c.l.b16 %v619
        %v1225 = vunpack.c.h.b16 %v619
        %v1226 = vunpack.c.l.b16 %v620
        %v1227 = vunpack.c.h.b16 %v620
        %v1228 = vunpack.c.l.b16 %v621
        %v1229 = vunpack.c.h.b16 %v621
        %v1230 = vunpack.c.l.b16 %v622
        %v1231 = vunpack.c.h.b16 %v622
        %v1232 = vunpack.c.l.b16 %v623
        %v1233 = vunpack.c.h.b16 %v623
        %v1234 = vunpack.c.l.b16 %v624
        %v1235 = vunpack.c.h.b16 %v624
        %v1236 = vunpack.c.l.b16 %v625
        %v1237 = vunpack.c.h.b16 %v625
        %v1238 = vunpack.c.l.b16 %v626
        %v1239 = vunpack.c.h.b16 %v626
        %v1240 = vunpack.c.l.b16 %v627
        %v1241 = vunpack.c.h.b16 %v627
        %v1242 = vunpack.c.l.b16 %v628
        %v1243 = vunpack.c.h.b16 %v628
        %v1244 = vunpack.c.l.b16 %v629
        %v1245 = vunpack.c.h.b16 %v629
        %v1246 = vunpack.c.l.b16 %v630
        %v1247 = vunpack.c.h.b16 %v630
        %v1248 = vunpack.c.l.b16 %v631
        %v1249 = vunpack.c.h.b16 %v631
        %v1250 = vunpack.c.l.b16 %v632
        %v1251 = vunpack.c.h.b16 %v632
        %v1252 = vunpack.c.l.b16 %v633
        %v1253 = vunpack.c.h.b16 %v633
        %v1254 = vunpack.c.l.b16 %v634
        %v1255 = vunpack.c.h.b16 %v634
        %v1256 = vunpack.c.l.b16 %v635
        %v1257 = vunpack.c.h.b16 %v635
        %v1258 = vunpack.c.l.b16 %v636
        %v1259 = vunpack.c.h.b16 %v636
        %v1260 = vunpack.c.l.b16 %v637
        %v1261 = vunpack.c.h.b16 %v637
        %v1262 = vunpack.c.l.b16 %v638
        %v1263 = vunpack.c.h.b16 %v638
        %v1264 = vunpack.c.l.b16 %v639
        %v1265 = vunpack.c.h.b16 %v639
        %v1266 = vunpack.c.l.b16 %v640
        %v1267 = vunpack.c.h.b16 %v640
        %v1268 = vunpack.c.l.b16 %v641
        %v1269 = vunpack.c.h.b16 %v641
        %v1270 = vunpack.c.l.b16 %v642
        %v1271 = vunpack.c.h.b16 %v642
        %v1272 = vunpack.c.l.b16 %v643
        %v1273 = vunpack.c.h.b16 %v643
        %v1274 = vunpack.c.l.b16 %v644
        %v1275 = vunpack.c.h.b16 %v644
        %v1276 = vunpack.c.l.b16 %v645
        %v1277 = vunpack.c.h.b16 %v645
        %v1278 = vunpack.c.l.b16 %v646
        %v1279 = vunpack.c.h.b16 %v646
        %v1280 = vunpack.c.l.b16 %v647
        %v1281 = vunpack.c.h.b16 %v647
        %v1282 = vunpack.c.l.b16 %v648
        %v1283 = vunpack.c.h.b16 %v648
        %v1284 = vunpack.c.l.b16 %v649
        %v1285 = vunpack.c.h.b16 %v649
        %v1286 = vunpack.c.l.b16 %v650
        %v1287 = vunpack.c.h.b16 %v650
        %v1288 = vunpack.c.l.b16 %v651
        %v1289 = vunpack.c.h.b16 %v651
        %v1290 = vunpack.c.l.b16 %v652
        %v1291 = vunpack.c.h.b16 %v652
        %v1292 = vunpack.c.l.b16 %v653
        %v1293 = vunpack.c.h.b16 %v653
        %v1294 = vunpack.c.l.b16 %v654
        %v1295 = vunpack.c.h.b16 %v654
        %v1296 = vunpack.c.l.b16 %v655
        %v1297 = vunpack.c.h.b16 %v655
        %v1298 = vunpack.c.l.b16 %v656
        %v1299 = vunpack.c.h.b16 %v656
        %v1300 = vunpack.c.l.b16 %v657
        %v1301 = vunpack.c.h.b16 %v657
        %v1302 = vunpack.c.l.b16 %v658
        %v1303 = vunpack.c.h.b16 %v658
        %v1304 = vunpack.c.l.b16 %v659
        %v1305 = vunpack.c.h.b16 %v659
        %v1306 = vunpack.c.l.b16 %v660
        %v1307 = vunpack.c.h.b16 %v660
        %v1308 = vunpack.c.l.b16 %v661
        %v1309 = vunpack.c.h.b16 %v661
        %v1310 = vunpack.c.l.b16 %v662
        %v1311 = vunpack.c.h.b16 %v662
        %v1312 = vunpack.c.l.b16 %v663
        %v1313 = vunpack.c.h.b16 %v663
        %v1314 = vunpack.c.l.b16 %v664
        %v1315 = vunpack.c.h.b16 %v664
        %v1316 = vunpack.c.l.b16 %v665
        %v1317 = vunpack.c.h.b16 %v665
        %v1318 = vunpack.c.l.b16 %v666
        %v1319 = vunpack.c.h.b16 %v666
        %v1320 = vunpack.c.l.b16 %v667
        %v1321 = vunpack.c.h.b16 %v667
        %v1322 = vunpack.c.l.b16 %v668
        %v1323 = vunpack.c.h.b16 %v668
        %v1324 = vunpack.c.l.b16 %v669
        %v1325 = vunpack.c.h.b16 %v669
        %v1326 = vunpack.c.l.b16 %v670
        %v1327 = vunpack.c.h.b16 %v670
        %v1328 = vunpack.c.l.b16 %v671
        %v1329 = vunpack.c.h.b16 %v671
        %v1330 = vunpack.c.l.b16 %v672
        %v1331 = vunpack.c.h.b16 %v672
        %v1332 = vunpack.c.l.b16 %v673
        %v1333 = vunpack.c.h.b16 %v673
        %v1334 = vunpack.c.l.b16 %v674
        %v1335 = vunpack.c.h.b16 %v674
        %v1336 = vunpack.c.l.b16 %v675
        %v1337 = vunpack.c.h.b16 %v675
        %v1338 = vunpack.c.l.b16 %v676
        %v1339 = vunpack.c.h.b16 %v676
        %v1340 = vunpack.c.l.b16 %v677
        %v1341 = vunpack.c.h.b16 %v677
        %v1342 = vunpack.c.l.b16 %v678
        %v1343 = vunpack.c.h.b16 %v678
        %v1344 = vunpack.c.l.b16 %v679
        %v1345 = vunpack.c.h.b16 %v679
        %v1346 = vunpack.c.l.b16 %v680
        %v1347 = vunpack.c.h.b16 %v680
        %v1348 = vunpack.c.l.b16 %v681
        %v1349 = vunpack.c.h.b16 %v681
        %v1350 = vunpack.c.l.b16 %v682
        %v1351 = vunpack.c.h.b16 %v682
        %v1352 = vunpack.c.l.b16 %v683
        %v1353 = vunpack.c.h.b16 %v683
        %v1354 = vunpack.c.l.b16 %v684
        %v1355 = vunpack.c.h.b16 %v684
        %v1356 = vunpack.c.l.b16 %v685
        %v1357 = vunpack.c.h.b16 %v685
        %v1358 = vunpack.c.l.b16 %v686
        %v1359 = vunpack.c.h.b16 %v686
        %v1360 = vunpack.c.l.b16 %v687
        %v1361 = vunpack.c.h.b16 %v687
        %v1362 = vunpack.c.l.b16 %v688
        %v1363 = vunpack.c.h.b16 %v688
        %v1364 = vunpack.c.l.b16 %v689
        %v1365 = vunpack.c.h.b16 %v689
        %v1366 = vunpack.c.l.b16 %v690
        %v1367 = vunpack.c.h.b16 %v690
        %v1368 = vunpack.c.l.b16 %v691
        %v1369 = vunpack.c.h.b16 %v691
        %v1370 = vunpack.c.l.b16 %v692
        %v1371 = vunpack.c.h.b16 %v692
        %v1372 = vunpack.c.l.b16 %v693
        %v1373 = vunpack.c.h.b16 %v693
        %v1374 = vpack.c.b16 %v986, %v982
        %v1375 = vpack.c.b16 %v987, %v983
        %v1376 = vpack.c.b16 %v988, %v984
        %v1377 = vpack.c.b16 %v989, %v985
        %v1378 = vpack.c.b16 %v994, %v990
        %v1379 = vpack.c.b16 %v995, %v991
        %v1380 = vpack.c.b16 %v996, %v992
        %v1381 = vpack.c.b16 %v997, %v993
        %v1382 = vpack.c.b16 %v1002, %v998
        %v1383 = vpack.c.b16 %v1003, %v999
        %v1384 = vpack.c.b16 %v1004, %v1000
        %v1385 = vpack.c.b16 %v1005, %v1001
        %v1386 = vpack.c.b16 %v1010, %v1006
        %v1387 = vpack.c.b16 %v1011, %v1007
        %v1388 = vpack.c.b16 %v1012, %v1008
        %v1389 = vpack.c.b16 %v1013, %v1009
        %v1390 = vpack.c.b16 %v1018, %v1014
        %v1391 = vpack.c.b16 %v1019, %v1015
        %v1392 = vpack.c.b16 %v1020, %v1016
        %v1393 = vpack.c.b16 %v1021, %v1017
        %v1394 = vpack.c.b16 %v1026, %v1022
        %v1395 = vpack.c.b16 %v1027, %v1023
        %v1396 = vpack.c.b16 %v1028, %v1024
        %v1397 = vpack.c.b16 %v1029, %v1025
        %v1398 = vpack.c.b16 %v1034, %v1030
        %v1399 = vpack.c.b16 %v1035, %v1031
        %v1400 = vpack.c.b16 %v1036, %v1032
        %v1401 = vpack.c.b16 %v1037, %v1033
        %v1402 = vpack.c.b16 %v1042, %v1038
        %v1403 = vpack.c.b16 %v1043, %v1039
        %v1404 = vpack.c.b16 %v1044, %v1040
        %v1405 = vpack.c.b16 %v1045, %v1041
        %v1406 = vpack.c.b16 %v1050, %v1046
        %v1407 = vpack.c.b16 %v1051, %v1047
        %v1408 = vpack.c.b16 %v1052, %v1048
        %v1409 = vpack.c.b16 %v1053, %v1049
        %v1410 = vpack.c.b16 %v1058, %v1054
        %v1411 = vpack.c.b16 %v1059, %v1055
        %v1412 = vpack.c.b16 %v1060, %v1056
        %v1413 = vpack.c.b16 %v1061, %v1057
        %v1414 = vpack.c.b16 %v1066, %v1062
        %v1415 = vpack.c.b16 %v1067, %v1063
        %v1416 = vpack.c.b16 %v1068, %v1064
        %v1417 = vpack.c.b16 %v1069, %v1065
        %v1418 = vpack.c.b16 %v1074, %v1070
        %v1419 = vpack.c.b16 %v1075, %v1071
        %v1420 = vpack.c.b16 %v1076, %v1072
        %v1421 = vpack.c.b16 %v1077, %v1073
        %v1422 = vpack.c.b16 %v1082, %v1078
        %v1423 = vpack.c.b16 %v1083, %v1079
        %v1424 = vpack.c.b16 %v1084, %v1080
        %v1425 = vpack.c.b16 %v1085, %v1081
        %v1426 = vpack.c.b16 %v1090, %v1086
        %v1427 = vpack.c.b16 %v1091, %v1087
        %v1428 = vpack.c.b16 %v1092, %v1088
        %v1429 = vpack.c.b16 %v1093, %v1089
        %v1430 = vpack.c.b16 %v1098, %v1094
        %v1431 = vpack.c.b16 %v1099, %v1095
        %v1432 = vpack.c.b16 %v1100, %v1096
        %v1433 = vpack.c.b16 %v1101, %v1097
        %v1434 = vpack.c.b16 %v1106, %v1102
        %v1435 = vpack.c.b16 %v1107, %v1103
        %v1436 = vpack.c.b16 %v1108, %v1104
        %v1437 = vpack.c.b16 %v1109, %v1105
        %v1438 = vpack.c.b16 %v1114, %v1110
        %v1439 = vpack.c.b16 %v1115, %v1111
        %v1440 = vpack.c.b16 %v1116, %v1112
        %v1441 = vpack.c.b16 %v1117, %v1113
        %v1442 = vpack.c.b16 %v1122, %v1118
        %v1443 = vpack.c.b16 %v1123, %v1119
        %v1444 = vpack.c.b16 %v1124, %v1120
        %v1445 = vpack.c.b16 %v1125, %v1121
        %v1446 = vpack.c.b16 %v1130, %v1126
        %v1447 = vpack.c.b16 %v1131, %v1127
        %v1448 = vpack.c.b16 %v1132, %v1128
        %v1449 = vpack.c.b16 %v1133, %v1129
        %v1450 = vpack.c.b16 %v1138, %v1134
        %v1451 = vpack.c.b16 %v1139, %v1135
        %v1452 = vpack.c.b16 %v1140, %v1136
        %v1453 = vpack.c.b16 %v1141, %v1137
        %v1454 = vpack.c.b16 %v1146, %v1142
        %v1455 = vpack.c.b16 %v1147, %v1143
        %v1456 = vpack.c.b16 %v1148, %v1144
        %v1457 = vpack.c.b16 %v1149, %v1145
        %v1458 = vpack.c.b16 %v1154, %v1150
        %v1459 = vpack.c.b16 %v1155, %v1151
        %v1460 = vpack.c.b16 %v1156, %v1152
        %v1461 = vpack.c.b16 %v1157, %v1153
        %v1462 = vpack.c.b16 %v1162, %v1158
        %v1463 = vpack.c.b16 %v1163, %v1159
        %v1464 = vpack.c.b16 %v1164, %v1160
        %v1465 = vpack.c.b16 %v1165, %v1161
        %v1466 = vpack.c.b16 %v1170, %v1166
        %v1467 = vpack.c.b16 %v1171, %v1167
        %v1468 = vpack.c.b16 %v1172, %v1168
        %v1469 = vpack.c.b16 %v1173, %v1169
        %v1470 = vpack.c.b16 %v1178, %v1174
        %v1471 = vpack.c.b16 %v1179, %v1175
        %v1472 = vpack.c.b16 %v1180, %v1176
        %v1473 = vpack.c.b16 %v1181, %v1177
        %v1474 = vpack.c.b16 %v1186, %v1182
        %v1475 = vpack.c.b16 %v1187, %v1183
        %v1476 = vpack.c.b16 %v1188, %v1184
        %v1477 = vpack.c.b16 %v1189, %v1185
        %v1478 = vpack.c.b16 %v1194, %v1190
        %v1479 = vpack.c.b16 %v1195, %v1191
        %v1480 = vpack.c.b16 %v1196, %v1192
        %v1481 = vpack.c.b16 %v1197, %v1193
        %v1482 = vpack.c.b16 %v1202, %v1198
        %v1483 = vpack.c.b16 %v1203, %v1199
        %v1484 = vpack.c.b16 %v1204, %v1200
        %v1485 = vpack.c.b16 %v1205, %v1201
        %v1486 = vpack.c.b16 %v1210, %v1206
        %v1487 = vpack.c.b16 %v1211, %v1207
        %v1488 = vpack.c.b16 %v1212, %v1208
        %v1489 = vpack.c.b16 %v1213, %v1209
        %v1490 = vpack.c.b16 %v1218, %v1214
        %v1491 = vpack.c.b16 %v1219, %v1215
        %v1492 = vpack.c.b16 %v1220, %v1216
        %v1493 = vpack.c.b16 %v1221, %v1217
        %v1494 = vpack.c.b16 %v1226, %v1222
        %v1495 = vpack.c.b16 %v1227, %v1223
        %v1496 = vpack.c.b16 %v1228, %v1224
        %v1497 = vpack.c.b16 %v1229, %v1225
        %v1498 = vpack.c.b16 %v1234, %v1230
        %v1499 = vpack.c.b16 %v1235, %v1231
        %v1500 = vpack.c.b16 %v1236, %v1232
        %v1501 = vpack.c.b16 %v1237, %v1233
        %v1502 = vpack.c.b16 %v1242, %v1238
        %v1503 = vpack.c.b16 %v1243, %v1239
        %v1504 = vpack.c.b16 %v1244, %v1240
        %v1505 = vpack.c.b16 %v1245, %v1241
        %v1506 = vpack.c.b16 %v1250, %v1246
        %v1507 = vpack.c.b16 %v1251, %v1247
        %v1508 = vpack.c.b16 %v1252, %v1248
        %v1509 = vpack.c.b16 %v1253, %v1249
        %v1510 = vpack.c.b16 %v1258, %v1254
        %v1511 = vpack.c.b16 %v1259, %v1255
        %v1512 = vpack.c.b16 %v1260, %v1256
        %v1513 = vpack.c.b16 %v1261, %v1257
        %v1514 = vpack.c.b16 %v1266, %v1262
        %v1515 = vpack.c.b16 %v1267, %v1263
        %v1516 = vpack.c.b16 %v1268, %v1264
        %v1517 = vpack.c.b16 %v1269, %v1265
        %v1518 = vpack.c.b16 %v1274, %v1270
        %v1519 = vpack.c.b16 %v1275, %v1271
        %v1520 = vpack.c.b16 %v1276, %v1272
        %v1521 = vpack.c.b16 %v1277, %v1273
        %v1522 = vpack.c.b16 %v1282, %v1278
        %v1523 = vpack.c.b16 %v1283, %v1279
        %v1524 = vpack.c.b16 %v1284, %v1280
        %v1525 = vpack.c.b16 %v1285, %v1281
        %v1526 = vpack.c.b16 %v1290, %v1286
        %v1527 = vpack.c.b16 %v1291, %v1287
        %v1528 = vpack.c.b16 %v1292, %v1288
        %v1529 = vpack.c.b16 %v1293, %v1289
        %v1530 = vpack.c.b16 %v1298, %v1294
        %v1531 = vpack.c.b16 %v1299, %v1295
        %v1532 = vpack.c.b16 %v1300, %v1296
        %v1533 = vpack.c.b16 %v1301, %v1297
        %v1534 = vpack.c.b16 %v1306, %v1302
        %v1535 = vpack.c.b16 %v1307, %v1303
        %v1536 = vpack.c.b16 %v1308, %v1304
        %v1537 = vpack.c.b16 %v1309, %v1305
        %v1538 = vpack.c.b16 %v1314, %v1310
        %v1539 = vpack.c.b16 %v1315, %v1311
        %v1540 = vpack.c.b16 %v1316, %v1312
        %v1541 = vpack.c.b16 %v1317, %v1313
        %v1542 = vpack.c.b16 %v1322, %v1318
        %v1543 = vpack.c.b16 %v1323, %v1319
        %v1544 = vpack.c.b16 %v1324, %v1320
        %v1545 = vpack.c.b16 %v1325, %v1321
        %v1546 = vpack.c.b16 %v1330, %v1326
        %v1547 = vpack.c.b16 %v1331, %v1327
        %v1548 = vpack.c.b16 %v1332, %v1328
        %v1549 = vpack.c.b16 %v1333, %v1329
        %v1550 = vpack.c.b16 %v1338, %v1334
        %v1551 = vpack.c.b16 %v1339, %v1335
        %v1552 = vpack.c.b16 %v1340, %v1336
        %v1553 = vpack.c.b16 %v1341, %v1337
        %v1554 = vpack.c.b16 %v1346, %v1342
        %v1555 = vpack.c.b16 %v1347, %v1343
        %v1556 = vpack.c.b16 %v1348, %v1344
        %v1557 = vpack.c.b16 %v1349, %v1345
        %v1558 = vpack.c.b16 %v1354, %v1350
        %v1559 = vpack.c.b16 %v1355, %v1351
        %v1560 = vpack.c.b16 %v1356, %v1352
        %v1561 = vpack.c.b16 %v1357, %v1353
        %v1562 = vpack.c.b16 %v1362, %v1358
        %v1563 = vpack.c.b16 %v1363, %v1359
        %v1564 = vpack.c.b16 %v1364, %v1360
        %v1565 = vpack.c.b16 %v1365, %v1361
        %v1566 = vpack.c.b16 %v1370, %v1366
        %v1567 = vpack.c.b16 %v1371, %v1367
        %v1568 = vpack.c.b16 %v1372, %v1368
        %v1569 = vpack.c.b16 %v1373, %v1369
        %vm1766 = vcmask 130048
        %v1768 = vsel %vm1766, %v766, 0
        %v1771 = vsel %vm1766, %v773, 0
        %1773 = vmatprep.subr.bf16.mxu0 %v1375
        %1774 = vmatpush1.bf16.msra.mxu0 %v1374
        %1775 = vmatprep.subr.bf16.mxu0 %v1379
        %1776 = vmatpush1.bf16.msra.mxu0 %v1378
        %1777 = vmatprep.subr.bf16.mxu0 %v1383
        %1778 = vmatpush1.bf16.msra.mxu0 %v1382
        %1779 = vmatprep.subr.bf16.mxu0 %v1387
        %1780 = vmatpush1.bf16.msra.mxu0 %v1386
        %1781 = vmatprep.subr.bf16.mxu0 %v1391
        %1782 = vmatpush1.bf16.msra.mxu0 %v1390
        %1783 = vmatprep.subr.bf16.mxu0 %v1395
        %1784 = vmatpush1.bf16.msra.mxu0 %v1394
        %1785 = vmatprep.subr.bf16.mxu0 %v1399
        %1786 = vmatpush1.bf16.msra.mxu0 %v1398
        %1787 = vmatprep.subr.bf16.mxu0 %v1403
        %1788 = vmatpush1.bf16.msra.mxu0 %v1402
        %1789 = vmatprep.subr.bf16.mxu0 %v1407
        %1790 = vmatpush1.bf16.msra.mxu0 %v1406
        %1791 = vmatprep.subr.bf16.mxu0 %v1411
        %1792 = vmatpush1.bf16.msra.mxu0 %v1410
        %1793 = vmatprep.subr.bf16.mxu0 %v1415
        %1794 = vmatpush1.bf16.msra.mxu0 %v1414
        %1795 = vmatprep.subr.bf16.mxu0 %v1419
        %1796 = vmatpush1.bf16.msra.mxu0 %v1418
        %1797 = vmatprep.subr.bf16.mxu0 %v1423
        %1798 = vmatpush1.bf16.msra.mxu0 %v1422
        %1799 = vmatprep.subr.bf16.mxu0 %v1427
        %1800 = vmatpush1.bf16.msra.mxu0 %v1426
        %1801 = vmatprep.subr.bf16.mxu0 %v1431
        %1802 = vmatpush1.bf16.msra.mxu0 %v1430
        %1803 = vmatprep.subr.bf16.mxu0 %v1435
        %1804 = vmatpush1.bf16.msra.mxu0 %v1434
        %1805 = vmatprep.mubr.bf16.mxu0 %v761
        %1806 = vmatmul.mubr.bf16.gmra.mrb[0].mxu0 %v760
        %v1807 = vpop.f32.mrb[0].mxu0
        %v1808 = vadd.f32 %v699, %v1807
        %v1809 = vpop.f32.mrb[0].mxu0
        %v1810 = vadd.f32 %v703, %v1809
        %v1811 = vpop.f32.mrb[0].mxu0
        %v1812 = vadd.f32 %v699, %v1811
        %v1813 = vpop.f32.mrb[0].mxu0
        %v1814 = vadd.f32 %v703, %v1813
        %1815 = vmatprep.mubr.bf16.mxu0 %v768
        %1816 = vmatmul.mubr.bf16.gmra.mrb[0].mxu0 %v767
        %v1817 = vpop.f32.mrb[0].mxu0
        %v1818 = vadd.f32 %v699, %v1817
        %v1819 = vpop.f32.mrb[0].mxu0
        %v1820 = vadd.f32 %v703, %v1819
        %v1821 = vpop.f32.mrb[0].mxu0
        %v1822 = vadd.f32 %v699, %v1821
        %v1823 = vpop.f32.mrb[0].mxu0
        %v1824 = vadd.f32 %v703, %v1823
        %1825 = vdwg.mxu0
        %1826 = vmatprep.subr.bf16.mxu0 %v1439
        %1827 = vmatpush1.bf16.msra.mxu0 %v1438
        %1828 = vmatprep.subr.bf16.mxu0 %v1443
        %1829 = vmatpush1.bf16.msra.mxu0 %v1442
        %1830 = vmatprep.subr.bf16.mxu0 %v1447
        %1831 = vmatpush1.bf16.msra.mxu0 %v1446
        %1832 = vmatprep.subr.bf16.mxu0 %v1451
        %1833 = vmatpush1.bf16.msra.mxu0 %v1450
        %1834 = vmatprep.subr.bf16.mxu0 %v1455
        %1835 = vmatpush1.bf16.msra.mxu0 %v1454
        %1836 = vmatprep.subr.bf16.mxu0 %v1459
        %1837 = vmatpush1.bf16.msra.mxu0 %v1458
        %1838 = vmatprep.subr.bf16.mxu0 %v1463
        %1839 = vmatpush1.bf16.msra.mxu0 %v1462
        %1840 = vmatprep.subr.bf16.mxu0 %v1467
        %1841 = vmatpush1.bf16.msra.mxu0 %v1466
        %1842 = vmatprep.subr.bf16.mxu0 %v1471
        %1843 = vmatpush1.bf16.msra.mxu0 %v1470
        %1844 = vmatprep.subr.bf16.mxu0 %v1475
        %1845 = vmatpush1.bf16.msra.mxu0 %v1474
        %1846 = vmatprep.subr.bf16.mxu0 %v1479
        %1847 = vmatpush1.bf16.msra.mxu0 %v1478
        %1848 = vmatprep.subr.bf16.mxu0 %v1483
        %1849 = vmatpush1.bf16.msra.mxu0 %v1482
        %1850 = vmatprep.subr.bf16.mxu0 %v1487
        %1851 = vmatpush1.bf16.msra.mxu0 %v1486
        %1852 = vmatprep.subr.bf16.mxu0 %v1491
        %1853 = vmatpush1.bf16.msra.mxu0 %v1490
        %1854 = vmatprep.subr.bf16.mxu0 %v1495
        %1855 = vmatpush1.bf16.msra.mxu0 %v1494
        %1856 = vmatprep.subr.bf16.mxu0 %v1499
        %1857 = vmatpush1.bf16.msra.mxu0 %v1498
        %1858 = vmatprep.mubr.bf16.mxu0 %v763
        %1859 = vmatmul.mubr.bf16.gmra.mrb[0].mxu0 %v762
        %v1860 = vpop.f32.mrb[0].mxu0
        %v1861 = vadd.f32 %v1808, %v1860
        %v1862 = vpop.f32.mrb[0].mxu0
        %v1863 = vadd.f32 %v1810, %v1862
        %v1864 = vpop.f32.mrb[0].mxu0
        %v1865 = vadd.f32 %v1812, %v1864
        %v1866 = vpop.f32.mrb[0].mxu0
        %v1867 = vadd.f32 %v1814, %v1866
        %1868 = vmatprep.mubr.bf16.mxu0 %v770
        %1869 = vmatmul.mubr.bf16.gmra.mrb[0].mxu0 %v769
        %v1870 = vpop.f32.mrb[0].mxu0
        %v1871 = vadd.f32 %v1818, %v1870
        %v1872 = vpop.f32.mrb[0].mxu0
        %v1873 = vadd.f32 %v1820, %v1872
        %v1874 = vpop.f32.mrb[0].mxu0
        %v1875 = vadd.f32 %v1822, %v1874
        %v1876 = vpop.f32.mrb[0].mxu0
        %v1877 = vadd.f32 %v1824, %v1876
        %1878 = vdwg.mxu0
        %1879 = vmatprep.subr.bf16.mxu0 %v1503
        %1880 = vmatpush1.bf16.msra.mxu0 %v1502
        %1881 = vmatprep.subr.bf16.mxu0 %v1507
        %1882 = vmatpush1.bf16.msra.mxu0 %v1506
        %1883 = vmatprep.subr.bf16.mxu0 %v1511
        %1884 = vmatpush1.bf16.msra.mxu0 %v1510
        %1885 = vmatprep.subr.bf16.mxu0 %v1515
        %1886 = vmatpush1.bf16.msra.mxu0 %v1514
        %1887 = vmatprep.subr.bf16.mxu0 %v1519
        %1888 = vmatpush1.bf16.msra.mxu0 %v1518
        %1889 = vmatprep.subr.bf16.mxu0 %v1523
        %1890 = vmatpush1.bf16.msra.mxu0 %v1522
        %1891 = vmatprep.subr.bf16.mxu0 %v1527
        %1892 = vmatpush1.bf16.msra.mxu0 %v1526
        %1893 = vmatprep.subr.bf16.mxu0 %v1531
        %1894 = vmatpush1.bf16.msra.mxu0 %v1530
        %1895 = vmatprep.subr.bf16.mxu0 %v1535
        %1896 = vmatpush1.bf16.msra.mxu0 %v1534
        %1897 = vmatprep.subr.bf16.mxu0 %v1539
        %1898 = vmatpush1.bf16.msra.mxu0 %v1538
        %1899 = vmatprep.subr.bf16.mxu0 %v1543
        %1900 = vmatpush1.bf16.msra.mxu0 %v1542
        %1901 = vmatprep.subr.bf16.mxu0 %v1547
        %1902 = vmatpush1.bf16.msra.mxu0 %v1546
        %1903 = vmatprep.subr.bf16.mxu0 %v1551
        %1904 = vmatpush1.bf16.msra.mxu0 %v1550
        %1905 = vmatprep.subr.bf16.mxu0 %v1555
        %1906 = vmatpush1.bf16.msra.mxu0 %v1554
        %1907 = vmatprep.subr.bf16.mxu0 %v1559
        %1908 = vmatpush1.bf16.msra.mxu0 %v1558
        %1909 = vmatprep.subr.bf16.mxu0 %v1563
        %1910 = vmatpush1.bf16.msra.mxu0 %v1562
        %1911 = vmatprep.mubr.bf16.mxu0 %v765
        %1912 = vmatmul.mubr.bf16.gmra.mrb[0].mxu0 %v764
        %v1913 = vpop.f32.mrb[0].mxu0
        %v1914 = vadd.f32 %v1861, %v1913
        %v1915 = vpop.f32.mrb[0].mxu0
        %v1916 = vadd.f32 %v1863, %v1915
        %v1917 = vpop.f32.mrb[0].mxu0
        %v1918 = vadd.f32 %v1865, %v1917
        %v1919 = vpop.f32.mrb[0].mxu0
        %v1920 = vadd.f32 %v1867, %v1919
        %1921 = vmatprep.mubr.bf16.mxu0 %v772
        %1922 = vmatmul.mubr.bf16.gmra.mrb[0].mxu0 %v771
        %v1923 = vpop.f32.mrb[0].mxu0
        %v1924 = vadd.f32 %v1871, %v1923
        %v1925 = vpop.f32.mrb[0].mxu0
        %v1926 = vadd.f32 %v1873, %v1925
        %v1927 = vpop.f32.mrb[0].mxu0
        %v1928 = vadd.f32 %v1875, %v1927
        %v1929 = vpop.f32.mrb[0].mxu0
        %v1930 = vadd.f32 %v1877, %v1929
        %1931 = vdwg.mxu0
        %1932 = vmatprep.subr.bf16.mxu0 %v1567
        %1933 = vmatpush1.bf16.msra.mxu0 %v1566
        %1934 = vmatprep.subr.bf16.mxu0 0
        %1935 = vmatpush1.bf16.msra.mxu0 0
        %1936 = vmatprep.subr.bf16.mxu0 0
        %1937 = vmatpush1.bf16.msra.mxu0 0
        %1938 = vmatprep.subr.bf16.mxu0 0
        %1939 = vmatpush1.bf16.msra.mxu0 0
        %1940 = vmatprep.subr.bf16.mxu0 0
        %1941 = vmatpush1.bf16.msra.mxu0 0
        %1942 = vmatprep.subr.bf16.mxu0 0
        %1943 = vmatpush1.bf16.msra.mxu0 0
        %1944 = vmatprep.subr.bf16.mxu0 0
        %1945 = vmatpush1.bf16.msra.mxu0 0
        %1946 = vmatprep.subr.bf16.mxu0 0
        %1947 = vmatpush1.bf16.msra.mxu0 0
        %1948 = vmatprep.subr.bf16.mxu0 0
        %1949 = vmatpush1.bf16.msra.mxu0 0
        %1950 = vmatprep.subr.bf16.mxu0 0
        %1951 = vmatpush1.bf16.msra.mxu0 0
        %1952 = vmatprep.subr.bf16.mxu0 0
        %1953 = vmatpush1.bf16.msra.mxu0 0
        %1954 = vmatprep.subr.bf16.mxu0 0
        %1955 = vmatpush1.bf16.msra.mxu0 0
        %1956 = vmatprep.subr.bf16.mxu0 0
        %1957 = vmatpush1.bf16.msra.mxu0 0
        %1958 = vmatprep.subr.bf16.mxu0 0
        %1959 = vmatpush1.bf16.msra.mxu0 0
        %1960 = vmatprep.subr.bf16.mxu0 0
        %1961 = vmatpush1.bf16.msra.mxu0 0
        %1962 = vmatprep.subr.bf16.mxu0 0
        %1963 = vmatpush1.bf16.msra.mxu0 0
        %1964 = vmatprep.mubr.bf16.mxu0 0
        %1965 = vmatmul.mubr.bf16.gmra.mrb[0].mxu0 %v1768
        %v1966 = vpop.f32.mrb[0].mxu0
        %v1967 = vadd.f32 %v1914, %v1966
        %v1968 = vpop.f32.mrb[0].mxu0
        %v1969 = vadd.f32 %v1916, %v1968
        %v1970 = vpop.f32.mrb[0].mxu0
        %v1971 = vadd.f32 %v1918, %v1970
        %v1972 = vpop.f32.mrb[0].mxu0
        %v1973 = vadd.f32 %v1920, %v1972
        %1974 = vmatprep.mubr.bf16.mxu0 0
        %1975 = vmatmul.mubr.bf16.gmra.mrb[0].mxu0 %v1771
        %v1976 = vpop.f32.mrb[0].mxu0
        %v1977 = vadd.f32 %v1924, %v1976
        %v1978 = vpop.f32.mrb[0].mxu0
        %v1979 = vadd.f32 %v1926, %v1978
        %v1980 = vpop.f32.mrb[0].mxu0
        %v1981 = vadd.f32 %v1928, %v1980
        %v1982 = vpop.f32.mrb[0].mxu0
        %v1983 = vadd.f32 %v1930, %v1982
        %1984 = vdwg.mxu0
        %1985 = vmatprep.subr.bf16.mxu0 %v1377
        %1986 = vmatpush1.bf16.msra.mxu0 %v1376
        %1987 = vmatprep.subr.bf16.mxu0 %v1381
        %1988 = vmatpush1.bf16.msra.mxu0 %v1380
        %1989 = vmatprep.subr.bf16.mxu0 %v1385
        %1990 = vmatpush1.bf16.msra.mxu0 %v1384
        %1991 = vmatprep.subr.bf16.mxu0 %v1389
        %1992 = vmatpush1.bf16.msra.mxu0 %v1388
        %1993 = vmatprep.subr.bf16.mxu0 %v1393
        %1994 = vmatpush1.bf16.msra.mxu0 %v1392
        %1995 = vmatprep.subr.bf16.mxu0 %v1397
        %1996 = vmatpush1.bf16.msra.mxu0 %v1396
        %1997 = vmatprep.subr.bf16.mxu0 %v1401
        %1998 = vmatpush1.bf16.msra.mxu0 %v1400
        %1999 = vmatprep.subr.bf16.mxu0 %v1405
        %2000 = vmatpush1.bf16.msra.mxu0 %v1404
        %2001 = vmatprep.subr.bf16.mxu0 %v1409
        %2002 = vmatpush1.bf16.msra.mxu0 %v1408
        %2003 = vmatprep.subr.bf16.mxu0 %v1413
        %2004 = vmatpush1.bf16.msra.mxu0 %v1412
        %2005 = vmatprep.subr.bf16.mxu0 %v1417
        %2006 = vmatpush1.bf16.msra.mxu0 %v1416
        %2007 = vmatprep.subr.bf16.mxu0 %v1421
        %2008 = vmatpush1.bf16.msra.mxu0 %v1420
        %2009 = vmatprep.subr.bf16.mxu0 %v1425
        %2010 = vmatpush1.bf16.msra.mxu0 %v1424
        %2011 = vmatprep.subr.bf16.mxu0 %v1429
        %2012 = vmatpush1.bf16.msra.mxu0 %v1428
        %2013 = vmatprep.subr.bf16.mxu0 %v1433
        %2014 = vmatpush1.bf16.msra.mxu0 %v1432
        %2015 = vmatprep.subr.bf16.mxu0 %v1437
        %2016 = vmatpush1.bf16.msra.mxu0 %v1436
        %2017 = vmatprep.mubr.bf16.mxu0 %v761
        %2018 = vmatmul.mubr.bf16.gmra.mrb[0].mxu0 %v760
        %v2019 = vpop.f32.mrb[0].mxu0
        %v2020 = vadd.f32 %v707, %v2019
        %v2021 = vpop.f32.mrb[0].mxu0
        %v2022 = vadd.f32 %v711, %v2021
        %v2023 = vpop.f32.mrb[0].mxu0
        %v2024 = vadd.f32 %v707, %v2023
        %v2025 = vpop.f32.mrb[0].mxu0
        %v2026 = vadd.f32 %v711, %v2025
        %2027 = vmatprep.mubr.bf16.mxu0 %v768
        %2028 = vmatmul.mubr.bf16.gmra.mrb[0].mxu0 %v767
        %v2029 = vpop.f32.mrb[0].mxu0
        %v2030 = vadd.f32 %v707, %v2029
        %v2031 = vpop.f32.mrb[0].mxu0
        %v2032 = vadd.f32 %v711, %v2031
        %v2033 = vpop.f32.mrb[0].mxu0
        %v2034 = vadd.f32 %v707, %v2033
        %v2035 = vpop.f32.mrb[0].mxu0
        %v2036 = vadd.f32 %v711, %v2035
        %2037 = vdwg.mxu0
        %2038 = vmatprep.subr.bf16.mxu0 %v1441
        %2039 = vmatpush1.bf16.msra.mxu0 %v1440
        %2040 = vmatprep.subr.bf16.mxu0 %v1445
        %2041 = vmatpush1.bf16.msra.mxu0 %v1444
        %2042 = vmatprep.subr.bf16.mxu0 %v1449
        %2043 = vmatpush1.bf16.msra.mxu0 %v1448
        %2044 = vmatprep.subr.bf16.mxu0 %v1453
        %2045 = vmatpush1.bf16.msra.mxu0 %v1452
        %2046 = vmatprep.subr.bf16.mxu0 %v1457
        %2047 = vmatpush1.bf16.msra.mxu0 %v1456
        %2048 = vmatprep.subr.bf16.mxu0 %v1461
        %2049 = vmatpush1.bf16.msra.mxu0 %v1460
        %2050 = vmatprep.subr.bf16.mxu0 %v1465
        %2051 = vmatpush1.bf16.msra.mxu0 %v1464
        %2052 = vmatprep.subr.bf16.mxu0 %v1469
        %2053 = vmatpush1.bf16.msra.mxu0 %v1468
        %2054 = vmatprep.subr.bf16.mxu0 %v1473
        %2055 = vmatpush1.bf16.msra.mxu0 %v1472
        %2056 = vmatprep.subr.bf16.mxu0 %v1477
        %2057 = vmatpush1.bf16.msra.mxu0 %v1476
        %2058 = vmatprep.subr.bf16.mxu0 %v1481
        %2059 = vmatpush1.bf16.msra.mxu0 %v1480
        %2060 = vmatprep.subr.bf16.mxu0 %v1485
        %2061 = vmatpush1.bf16.msra.mxu0 %v1484
        %2062 = vmatprep.subr.bf16.mxu0 %v1489
        %2063 = vmatpush1.bf16.msra.mxu0 %v1488
        %2064 = vmatprep.subr.bf16.mxu0 %v1493
        %2065 = vmatpush1.bf16.msra.mxu0 %v1492
        %2066 = vmatprep.subr.bf16.mxu0 %v1497
        %2067 = vmatpush1.bf16.msra.mxu0 %v1496
        %2068 = vmatprep.subr.bf16.mxu0 %v1501
        %2069 = vmatpush1.bf16.msra.mxu0 %v1500
        %2070 = vmatprep.mubr.bf16.mxu0 %v763
        %2071 = vmatmul.mubr.bf16.gmra.mrb[0].mxu0 %v762
        %v2072 = vpop.f32.mrb[0].mxu0
        %v2073 = vadd.f32 %v2020, %v2072
        %v2074 = vpop.f32.mrb[0].mxu0
        %v2075 = vadd.f32 %v2022, %v2074
        %v2076 = vpop.f32.mrb[0].mxu0
        %v2077 = vadd.f32 %v2024, %v2076
        %v2078 = vpop.f32.mrb[0].mxu0
        %v2079 = vadd.f32 %v2026, %v2078
        %2080 = vmatprep.mubr.bf16.mxu0 %v770
        %2081 = vmatmul.mubr.bf16.gmra.mrb[0].mxu0 %v769
        %v2082 = vpop.f32.mrb[0].mxu0
        %v2083 = vadd.f32 %v2030, %v2082
        %v2084 = vpop.f32.mrb[0].mxu0
        %v2085 = vadd.f32 %v2032, %v2084
        %v2086 = vpop.f32.mrb[0].mxu0
        %v2087 = vadd.f32 %v2034, %v2086
        %v2088 = vpop.f32.mrb[0].mxu0
        %v2089 = vadd.f32 %v2036, %v2088
        %2090 = vdwg.mxu0
        %2091 = vmatprep.subr.bf16.mxu0 %v1505
        %2092 = vmatpush1.bf16.msra.mxu0 %v1504
        %2093 = vmatprep.subr.bf16.mxu0 %v1509
        %2094 = vmatpush1.bf16.msra.mxu0 %v1508
        %2095 = vmatprep.subr.bf16.mxu0 %v1513
        %2096 = vmatpush1.bf16.msra.mxu0 %v1512
        %2097 = vmatprep.subr.bf16.mxu0 %v1517
        %2098 = vmatpush1.bf16.msra.mxu0 %v1516
        %2099 = vmatprep.subr.bf16.mxu0 %v1521
        %2100 = vmatpush1.bf16.msra.mxu0 %v1520
        %2101 = vmatprep.subr.bf16.mxu0 %v1525
        %2102 = vmatpush1.bf16.msra.mxu0 %v1524
        %2103 = vmatprep.subr.bf16.mxu0 %v1529
        %2104 = vmatpush1.bf16.msra.mxu0 %v1528
        %2105 = vmatprep.subr.bf16.mxu0 %v1533
        %2106 = vmatpush1.bf16.msra.mxu0 %v1532
        %2107 = vmatprep.subr.bf16.mxu0 %v1537
        %2108 = vmatpush1.bf16.msra.mxu0 %v1536
        %2109 = vmatprep.subr.bf16.mxu0 %v1541
        %2110 = vmatpush1.bf16.msra.mxu0 %v1540
        %2111 = vmatprep.subr.bf16.mxu0 %v1545
        %2112 = vmatpush1.bf16.msra.mxu0 %v1544
        %2113 = vmatprep.subr.bf16.mxu0 %v1549
        %2114 = vmatpush1.bf16.msra.mxu0 %v1548
        %2115 = vmatprep.subr.bf16.mxu0 %v1553
        %2116 = vmatpush1.bf16.msra.mxu0 %v1552
        %2117 = vmatprep.subr.bf16.mxu0 %v1557
        %2118 = vmatpush1.bf16.msra.mxu0 %v1556
        %2119 = vmatprep.subr.bf16.mxu0 %v1561
        %2120 = vmatpush1.bf16.msra.mxu0 %v1560
        %2121 = vmatprep.subr.bf16.mxu0 %v1565
        %2122 = vmatpush1.bf16.msra.mxu0 %v1564
        %2123 = vmatprep.mubr.bf16.mxu0 %v765
        %2124 = vmatmul.mubr.bf16.gmra.mrb[0].mxu0 %v764
        %v2125 = vpop.f32.mrb[0].mxu0
        %v2126 = vadd.f32 %v2073, %v2125
        %v2127 = vpop.f32.mrb[0].mxu0
        %v2128 = vadd.f32 %v2075, %v2127
        %v2129 = vpop.f32.mrb[0].mxu0
        %v2130 = vadd.f32 %v2077, %v2129
        %v2131 = vpop.f32.mrb[0].mxu0
        %v2132 = vadd.f32 %v2079, %v2131
        %2133 = vmatprep.mubr.bf16.mxu0 %v772
        %2134 = vmatmul.mubr.bf16.gmra.mrb[0].mxu0 %v771
        %v2135 = vpop.f32.mrb[0].mxu0
        %v2136 = vadd.f32 %v2083, %v2135
        %v2137 = vpop.f32.mrb[0].mxu0
        %v2138 = vadd.f32 %v2085, %v2137
        %v2139 = vpop.f32.mrb[0].mxu0
        %v2140 = vadd.f32 %v2087, %v2139
        %v2141 = vpop.f32.mrb[0].mxu0
        %v2142 = vadd.f32 %v2089, %v2141
        %2143 = vdwg.mxu0
        %2144 = vmatprep.subr.bf16.mxu0 %v1569
        %2145 = vmatpush1.bf16.msra.mxu0 %v1568
        %2146 = vmatprep.subr.bf16.mxu0 0
        %2147 = vmatpush1.bf16.msra.mxu0 0
        %2148 = vmatprep.subr.bf16.mxu0 0
        %2149 = vmatpush1.bf16.msra.mxu0 0
        %2150 = vmatprep.subr.bf16.mxu0 0
        %2151 = vmatpush1.bf16.msra.mxu0 0
        %2152 = vmatprep.subr.bf16.mxu0 0
        %2153 = vmatpush1.bf16.msra.mxu0 0
        %2154 = vmatprep.subr.bf16.mxu0 0
        %2155 = vmatpush1.bf16.msra.mxu0 0
        %2156 = vmatprep.subr.bf16.mxu0 0
        %2157 = vmatpush1.bf16.msra.mxu0 0
        %2158 = vmatprep.subr.bf16.mxu0 0
        %2159 = vmatpush1.bf16.msra.mxu0 0
        %2160 = vmatprep.subr.bf16.mxu0 0
        %2161 = vmatpush1.bf16.msra.mxu0 0
        %2162 = vmatprep.subr.bf16.mxu0 0
        %2163 = vmatpush1.bf16.msra.mxu0 0
        %2164 = vmatprep.subr.bf16.mxu0 0
        %2165 = vmatpush1.bf16.msra.mxu0 0
        %2166 = vmatprep.subr.bf16.mxu0 0
        %2167 = vmatpush1.bf16.msra.mxu0 0
        %2168 = vmatprep.subr.bf16.mxu0 0
        %2169 = vmatpush1.bf16.msra.mxu0 0
        %2170 = vmatprep.subr.bf16.mxu0 0
        %2171 = vmatpush1.bf16.msra.mxu0 0
        %2172 = vmatprep.subr.bf16.mxu0 0
        %2173 = vmatpush1.bf16.msra.mxu0 0
        %2174 = vmatprep.subr.bf16.mxu0 0
        %2175 = vmatpush1.bf16.msra.mxu0 0
        %2176 = vmatprep.mubr.bf16.mxu0 0
        %2177 = vmatmul.mubr.bf16.gmra.mrb[0].mxu0 %v1768
        %v2178 = vpop.f32.mrb[0].mxu0
        %v2179 = vadd.f32 %v2126, %v2178
        %v2180 = vpop.f32.mrb[0].mxu0
        %v2181 = vadd.f32 %v2128, %v2180
        %v2182 = vpop.f32.mrb[0].mxu0
        %v2183 = vadd.f32 %v2130, %v2182
        %v2184 = vpop.f32.mrb[0].mxu0
        %v2185 = vadd.f32 %v2132, %v2184
        %2186 = vmatprep.mubr.bf16.mxu0 0
        %2187 = vmatmul.mubr.bf16.gmra.mrb[0].mxu0 %v1771
        %v2188 = vpop.f32.mrb[0].mxu0
        %v2189 = vadd.f32 %v2136, %v2188
        %v2190 = vpop.f32.mrb[0].mxu0
        %v2191 = vadd.f32 %v2138, %v2190
        %v2192 = vpop.f32.mrb[0].mxu0
        %v2193 = vadd.f32 %v2140, %v2192
        %v2194 = vpop.f32.mrb[0].mxu0
        %v2195 = vadd.f32 %v2142, %v2194
        %2196 = vdwg.mxu0
        %v2197 = vmax.f32 %v1967, 0.0
        %v2198 = vmax.f32 %v1969, 0.0
        %v2199 = vmax.f32 %v2179, 0.0
        %v2200 = vmax.f32 %v2181, 0.0
        %v2201 = vmax.f32 %v1971, 0.0
        %v2202 = vmax.f32 %v1973, 0.0
        %v2203 = vmax.f32 %v2183, 0.0
        %v2204 = vmax.f32 %v2185, 0.0
        %v2205 = vmax.f32 %v1977, 0.0
        %v2206 = vmax.f32 %v1979, 0.0
        %v2207 = vmax.f32 %v2189, 0.0
        %v2208 = vmax.f32 %v2191, 0.0
        %v2209 = vmax.f32 %v1981, 0.0
        %v2210 = vmax.f32 %v1983, 0.0
        %v2211 = vmax.f32 %v2193, 0.0
        %v2212 = vmax.f32 %v2195, 0.0
        %v2213 = vpack.c.bf16 %v2201, %v2197
        %v2214 = vpack.c.bf16 %v2202, %v2198
        %v2215 = vpack.c.bf16 %v2203, %v2199
        %v2216 = vpack.c.bf16 %v2204, %v2200
        %v2217 = vpack.c.bf16 %v2209, %v2205
        %v2218 = vpack.c.bf16 %v2210, %v2206
        %v2219 = vpack.c.bf16 %v2211, %v2207
        %v2220 = vpack.c.bf16 %v2212, %v2208
        %v2221 = vld [vmem:[#allocation7] sm:$0xff]
        %v2222 = vld [vmem:[#allocation7 + $0x8] sm:$0xff]
        %v2223 = vld [vmem:[#allocation7 + $0x10] sm:$0xff]
        %v2224 = vld [vmem:[#allocation7 + $0x18] sm:$0xff]
        %v2225 = vld [vmem:[#allocation7 + $0x20] sm:$0xff]
        %v2226 = vld [vmem:[#allocation7 + $0x28] sm:$0xff]
        %v2227 = vld [vmem:[#allocation7 + $0x30] sm:$0xff]
        %v2228 = vld [vmem:[#allocation7 + $0x38] sm:$0xff]
        %v2229 = vld [vmem:[#allocation7 + $0x40] sm:$0xff]
        %v2230 = vld [vmem:[#allocation7 + $0x48] sm:$0xff]
        %v2231 = vld [vmem:[#allocation7 + $0x50] sm:$0xff]
        %v2232 = vld [vmem:[#allocation7 + $0x58] sm:$0xff]
        %v2233 = vld [vmem:[#allocation7 + $0x60] sm:$0xff]
        %v2234 = vld [vmem:[#allocation7 + $0x68] sm:$0xff]
        %v2235 = vld [vmem:[#allocation7 + $0x70] sm:$0xff]
        %v2236 = vld [vmem:[#allocation7 + $0x78] sm:$0xff]
        %v2237 = vld [vmem:[#allocation7 + $0x80] sm:$0xff]
        %v2238 = vld [vmem:[#allocation7 + $0x88] sm:$0xff]
        %v2239 = vld [vmem:[#allocation7 + $0x90] sm:$0xff]
        %v2240 = vld [vmem:[#allocation7 + $0x98] sm:$0xff]
        %v2241 = vld [vmem:[#allocation7 + $0xa0] sm:$0xff]
        %v2242 = vld [vmem:[#allocation7 + $0xa8] sm:$0xff]
        %v2243 = vld [vmem:[#allocation7 + $0xb0] sm:$0xff]
        %v2244 = vld [vmem:[#allocation7 + $0xb8] sm:$0xff]
        %v2245 = vld [vmem:[#allocation7 + $0xc0] sm:$0xff]
        %v2246 = vld [vmem:[#allocation7 + $0xc8] sm:$0xff]
        %v2247 = vld [vmem:[#allocation7 + $0xd0] sm:$0xff]
        %v2248 = vld [vmem:[#allocation7 + $0xd8] sm:$0xff]
        %v2249 = vld [vmem:[#allocation7 + $0xe0] sm:$0xff]
        %v2250 = vld [vmem:[#allocation7 + $0xe8] sm:$0xff]
        %v2251 = vld [vmem:[#allocation7 + $0xf0] sm:$0xff]
        %v2252 = vld [vmem:[#allocation7 + $0xf8] sm:$0xff]
        %v2253 = vld [vmem:[#allocation7 + $0x100] sm:$0xff]
        %v2254 = vld [vmem:[#allocation7 + $0x108] sm:$0xff]
        %v2255 = vld [vmem:[#allocation7 + $0x110] sm:$0xff]
        %v2256 = vld [vmem:[#allocation7 + $0x118] sm:$0xff]
        %v2257 = vld [vmem:[#allocation7 + $0x120] sm:$0xff]
        %v2258 = vld [vmem:[#allocation7 + $0x128] sm:$0xff]
        %v2259 = vld [vmem:[#allocation7 + $0x130] sm:$0xff]
        %v2260 = vld [vmem:[#allocation7 + $0x138] sm:$0xff]
        %v2261 = vld [vmem:[#allocation7 + $0x140] sm:$0xff]
        %v2262 = vld [vmem:[#allocation7 + $0x148] sm:$0xff]
        %v2263 = vld [vmem:[#allocation7 + $0x150] sm:$0xff]
        %v2264 = vld [vmem:[#allocation7 + $0x158] sm:$0xff]
        %v2265 = vld [vmem:[#allocation7 + $0x160] sm:$0xff]
        %v2266 = vld [vmem:[#allocation7 + $0x168] sm:$0xff]
        %v2267 = vld [vmem:[#allocation7 + $0x170] sm:$0xff]
        %v2268 = vld [vmem:[#allocation7 + $0x178] sm:$0xff]
        %v2269 = vld [vmem:[#allocation7 + $0x180] sm:$0xff]
        %v2270 = vld [vmem:[#allocation7 + $0x188] sm:$0xff]
        %v2271 = vld [vmem:[#allocation7 + $0x190] sm:$0xff]
        %v2272 = vld [vmem:[#allocation7 + $0x198] sm:$0xff]
        %v2273 = vld [vmem:[#allocation7 + $0x1a0] sm:$0xff]
        %v2274 = vld [vmem:[#allocation7 + $0x1a8] sm:$0xff]
        %v2275 = vld [vmem:[#allocation7 + $0x1b0] sm:$0xff]
        %v2276 = vld [vmem:[#allocation7 + $0x1b8] sm:$0xff]
        %v2277 = vld [vmem:[#allocation7 + $0x1c0] sm:$0xff]
        %v2278 = vld [vmem:[#allocation7 + $0x1c8] sm:$0xff]
        %v2279 = vld [vmem:[#allocation7 + $0x1d0] sm:$0xff]
        %v2280 = vld [vmem:[#allocation7 + $0x1d8] sm:$0xff]
        %v2281 = vld [vmem:[#allocation7 + $0x1e0] sm:$0xff]
        %v2282 = vld [vmem:[#allocation7 + $0x1e8] sm:$0xff]
        %v2283 = vld [vmem:[#allocation7 + $0x1f0] sm:$0xff]
        %v2284 = vld [vmem:[#allocation7 + $0x1f8] sm:$0xff]
        %v2285 = vld [vmem:[%s4] sm:$0x3]
        %v2287 = vlaneseq
        %v2288 = vshrl.u32 %v2287, 7
        %v2289 = vsub.s32 0, %v2288
        %v2290 = vrot.slane %v2285, %v2289
        %v2291 = vlaneseq
        %v2292 = vshrl.u32 %v2291, 7
        %v2293 = vsub.s32 1, %v2292
        %v2294 = vrot.slane %v2285, %v2293
        %v2361 = vunpack.c.l.b16 %v2221
        %v2362 = vunpack.c.h.b16 %v2221
        %v2363 = vunpack.c.l.b16 %v2222
        %v2364 = vunpack.c.h.b16 %v2222
        %v2365 = vunpack.c.l.b16 %v2223
        %v2366 = vunpack.c.h.b16 %v2223
        %v2367 = vunpack.c.l.b16 %v2224
        %v2368 = vunpack.c.h.b16 %v2224
        %v2369 = vunpack.c.l.b16 %v2225
        %v2370 = vunpack.c.h.b16 %v2225
        %v2371 = vunpack.c.l.b16 %v2226
        %v2372 = vunpack.c.h.b16 %v2226
        %v2373 = vunpack.c.l.b16 %v2227
        %v2374 = vunpack.c.h.b16 %v2227
        %v2375 = vunpack.c.l.b16 %v2228
        %v2376 = vunpack.c.h.b16 %v2228
        %v2377 = vunpack.c.l.b16 %v2229
        %v2378 = vunpack.c.h.b16 %v2229
        %v2379 = vunpack.c.l.b16 %v2230
        %v2380 = vunpack.c.h.b16 %v2230
        %v2381 = vunpack.c.l.b16 %v2231
        %v2382 = vunpack.c.h.b16 %v2231
        %v2383 = vunpack.c.l.b16 %v2232
        %v2384 = vunpack.c.h.b16 %v2232
        %v2385 = vunpack.c.l.b16 %v2233
        %v2386 = vunpack.c.h.b16 %v2233
        %v2387 = vunpack.c.l.b16 %v2234
        %v2388 = vunpack.c.h.b16 %v2234
        %v2389 = vunpack.c.l.b16 %v2235
        %v2390 = vunpack.c.h.b16 %v2235
        %v2391 = vunpack.c.l.b16 %v2236
        %v2392 = vunpack.c.h.b16 %v2236
        %v2393 = vunpack.c.l.b16 %v2237
        %v2394 = vunpack.c.h.b16 %v2237
        %v2395 = vunpack.c.l.b16 %v2238
        %v2396 = vunpack.c.h.b16 %v2238
        %v2397 = vunpack.c.l.b16 %v2239
        %v2398 = vunpack.c.h.b16 %v2239
        %v2399 = vunpack.c.l.b16 %v2240
        %v2400 = vunpack.c.h.b16 %v2240
        %v2401 = vunpack.c.l.b16 %v2241
        %v2402 = vunpack.c.h.b16 %v2241
        %v2403 = vunpack.c.l.b16 %v2242
        %v2404 = vunpack.c.h.b16 %v2242
        %v2405 = vunpack.c.l.b16 %v2243
        %v2406 = vunpack.c.h.b16 %v2243
        %v2407 = vunpack.c.l.b16 %v2244
        %v2408 = vunpack.c.h.b16 %v2244
        %v2409 = vunpack.c.l.b16 %v2245
        %v2410 = vunpack.c.h.b16 %v2245
        %v2411 = vunpack.c.l.b16 %v2246
        %v2412 = vunpack.c.h.b16 %v2246
        %v2413 = vunpack.c.l.b16 %v2247
        %v2414 = vunpack.c.h.b16 %v2247
        %v2415 = vunpack.c.l.b16 %v2248
        %v2416 = vunpack.c.h.b16 %v2248
        %v2417 = vunpack.c.l.b16 %v2249
        %v2418 = vunpack.c.h.b16 %v2249
        %v2419 = vunpack.c.l.b16 %v2250
        %v2420 = vunpack.c.h.b16 %v2250
        %v2421 = vunpack.c.l.b16 %v2251
        %v2422 = vunpack.c.h.b16 %v2251
        %v2423 = vunpack.c.l.b16 %v2252
        %v2424 = vunpack.c.h.b16 %v2252
        %v2425 = vunpack.c.l.b16 %v2253
        %v2426 = vunpack.c.h.b16 %v2253
        %v2427 = vunpack.c.l.b16 %v2254
        %v2428 = vunpack.c.h.b16 %v2254
        %v2429 = vunpack.c.l.b16 %v2255
        %v2430 = vunpack.c.h.b16 %v2255
        %v2431 = vunpack.c.l.b16 %v2256
        %v2432 = vunpack.c.h.b16 %v2256
        %v2433 = vunpack.c.l.b16 %v2257
        %v2434 = vunpack.c.h.b16 %v2257
        %v2435 = vunpack.c.l.b16 %v2258
        %v2436 = vunpack.c.h.b16 %v2258
        %v2437 = vunpack.c.l.b16 %v2259
        %v2438 = vunpack.c.h.b16 %v2259
        %v2439 = vunpack.c.l.b16 %v2260
        %v2440 = vunpack.c.h.b16 %v2260
        %v2441 = vunpack.c.l.b16 %v2261
        %v2442 = vunpack.c.h.b16 %v2261
        %v2443 = vunpack.c.l.b16 %v2262
        %v2444 = vunpack.c.h.b16 %v2262
        %v2445 = vunpack.c.l.b16 %v2263
        %v2446 = vunpack.c.h.b16 %v2263
        %v2447 = vunpack.c.l.b16 %v2264
        %v2448 = vunpack.c.h.b16 %v2264
        %v2449 = vunpack.c.l.b16 %v2265
        %v2450 = vunpack.c.h.b16 %v2265
        %v2451 = vunpack.c.l.b16 %v2266
        %v2452 = vunpack.c.h.b16 %v2266
        %v2453 = vunpack.c.l.b16 %v2267
        %v2454 = vunpack.c.h.b16 %v2267
        %v2455 = vunpack.c.l.b16 %v2268
        %v2456 = vunpack.c.h.b16 %v2268
        %v2457 = vunpack.c.l.b16 %v2269
        %v2458 = vunpack.c.h.b16 %v2269
        %v2459 = vunpack.c.l.b16 %v2270
        %v2460 = vunpack.c.h.b16 %v2270
        %v2461 = vunpack.c.l.b16 %v2271
        %v2462 = vunpack.c.h.b16 %v2271
        %v2463 = vunpack.c.l.b16 %v2272
        %v2464 = vunpack.c.h.b16 %v2272
        %v2465 = vunpack.c.l.b16 %v2273
        %v2466 = vunpack.c.h.b16 %v2273
        %v2467 = vunpack.c.l.b16 %v2274
        %v2468 = vunpack.c.h.b16 %v2274
        %v2469 = vunpack.c.l.b16 %v2275
        %v2470 = vunpack.c.h.b16 %v2275
        %v2471 = vunpack.c.l.b16 %v2276
        %v2472 = vunpack.c.h.b16 %v2276
        %v2473 = vunpack.c.l.b16 %v2277
        %v2474 = vunpack.c.h.b16 %v2277
        %v2475 = vunpack.c.l.b16 %v2278
        %v2476 = vunpack.c.h.b16 %v2278
        %v2477 = vunpack.c.l.b16 %v2279
        %v2478 = vunpack.c.h.b16 %v2279
        %v2479 = vunpack.c.l.b16 %v2280
        %v2480 = vunpack.c.h.b16 %v2280
        %v2481 = vunpack.c.l.b16 %v2281
        %v2482 = vunpack.c.h.b16 %v2281
        %v2483 = vunpack.c.l.b16 %v2282
        %v2484 = vunpack.c.h.b16 %v2282
        %v2485 = vunpack.c.l.b16 %v2283
        %v2486 = vunpack.c.h.b16 %v2283
        %v2487 = vunpack.c.l.b16 %v2284
        %v2488 = vunpack.c.h.b16 %v2284
        %v2489 = vpack.c.b16 %v2363, %v2361
        %v2490 = vpack.c.b16 %v2364, %v2362
        %v2491 = vpack.c.b16 %v2367, %v2365
        %v2492 = vpack.c.b16 %v2368, %v2366
        %v2493 = vpack.c.b16 %v2371, %v2369
        %v2494 = vpack.c.b16 %v2372, %v2370
        %v2495 = vpack.c.b16 %v2375, %v2373
        %v2496 = vpack.c.b16 %v2376, %v2374
        %v2497 = vpack.c.b16 %v2379, %v2377
        %v2498 = vpack.c.b16 %v2380, %v2378
        %v2499 = vpack.c.b16 %v2383, %v2381
        %v2500 = vpack.c.b16 %v2384, %v2382
        %v2501 = vpack.c.b16 %v2387, %v2385
        %v2502 = vpack.c.b16 %v2388, %v2386
        %v2503 = vpack.c.b16 %v2391, %v2389
        %v2504 = vpack.c.b16 %v2392, %v2390
        %v2505 = vpack.c.b16 %v2395, %v2393
        %v2506 = vpack.c.b16 %v2396, %v2394
        %v2507 = vpack.c.b16 %v2399, %v2397
        %v2508 = vpack.c.b16 %v2400, %v2398
        %v2509 = vpack.c.b16 %v2403, %v2401
        %v2510 = vpack.c.b16 %v2404, %v2402
        %v2511 = vpack.c.b16 %v2407, %v2405
        %v2512 = vpack.c.b16 %v2408, %v2406
        %v2513 = vpack.c.b16 %v2411, %v2409
        %v2514 = vpack.c.b16 %v2412, %v2410
        %v2515 = vpack.c.b16 %v2415, %v2413
        %v2516 = vpack.c.b16 %v2416, %v2414
        %v2517 = vpack.c.b16 %v2419, %v2417
        %v2518 = vpack.c.b16 %v2420, %v2418
        %v2519 = vpack.c.b16 %v2423, %v2421
        %v2520 = vpack.c.b16 %v2424, %v2422
        %v2521 = vpack.c.b16 %v2427, %v2425
        %v2522 = vpack.c.b16 %v2428, %v2426
        %v2523 = vpack.c.b16 %v2431, %v2429
        %v2524 = vpack.c.b16 %v2432, %v2430
        %v2525 = vpack.c.b16 %v2435, %v2433
        %v2526 = vpack.c.b16 %v2436, %v2434
        %v2527 = vpack.c.b16 %v2439, %v2437
        %v2528 = vpack.c.b16 %v2440, %v2438
        %v2529 = vpack.c.b16 %v2443, %v2441
        %v2530 = vpack.c.b16 %v2444, %v2442
        %v2531 = vpack.c.b16 %v2447, %v2445
        %v2532 = vpack.c.b16 %v2448, %v2446
        %v2533 = vpack.c.b16 %v2451, %v2449
        %v2534 = vpack.c.b16 %v2452, %v2450
        %v2535 = vpack.c.b16 %v2455, %v2453
        %v2536 = vpack.c.b16 %v2456, %v2454
        %v2537 = vpack.c.b16 %v2459, %v2457
        %v2538 = vpack.c.b16 %v2460, %v2458
        %v2539 = vpack.c.b16 %v2463, %v2461
        %v2540 = vpack.c.b16 %v2464, %v2462
        %v2541 = vpack.c.b16 %v2467, %v2465
        %v2542 = vpack.c.b16 %v2468, %v2466
        %v2543 = vpack.c.b16 %v2471, %v2469
        %v2544 = vpack.c.b16 %v2472, %v2470
        %v2545 = vpack.c.b16 %v2475, %v2473
        %v2546 = vpack.c.b16 %v2476, %v2474
        %v2547 = vpack.c.b16 %v2479, %v2477
        %v2548 = vpack.c.b16 %v2480, %v2478
        %v2549 = vpack.c.b16 %v2483, %v2481
        %v2550 = vpack.c.b16 %v2484, %v2482
        %v2551 = vpack.c.b16 %v2487, %v2485
        %v2552 = vpack.c.b16 %v2488, %v2486
        %2617 = vmatprep.subr.bf16.mxu0 %v2490
        %2618 = vmatpush1.bf16.msra.mxu0 %v2489
        %2619 = vmatprep.subr.bf16.mxu0 %v2492
        %2620 = vmatpush1.bf16.msra.mxu0 %v2491
        %2621 = vmatprep.subr.bf16.mxu0 %v2494
        %2622 = vmatpush1.bf16.msra.mxu0 %v2493
        %2623 = vmatprep.subr.bf16.mxu0 %v2496
        %2624 = vmatpush1.bf16.msra.mxu0 %v2495
        %2625 = vmatprep.subr.bf16.mxu0 %v2498
        %2626 = vmatpush1.bf16.msra.mxu0 %v2497
        %2627 = vmatprep.subr.bf16.mxu0 %v2500
        %2628 = vmatpush1.bf16.msra.mxu0 %v2499
        %2629 = vmatprep.subr.bf16.mxu0 %v2502
        %2630 = vmatpush1.bf16.msra.mxu0 %v2501
        %2631 = vmatprep.subr.bf16.mxu0 %v2504
        %2632 = vmatpush1.bf16.msra.mxu0 %v2503
        %2633 = vmatprep.subr.bf16.mxu0 %v2506
        %2634 = vmatpush1.bf16.msra.mxu0 %v2505
        %2635 = vmatprep.subr.bf16.mxu0 %v2508
        %2636 = vmatpush1.bf16.msra.mxu0 %v2507
        %2637 = vmatprep.subr.bf16.mxu0 %v2510
        %2638 = vmatpush1.bf16.msra.mxu0 %v2509
        %2639 = vmatprep.subr.bf16.mxu0 %v2512
        %2640 = vmatpush1.bf16.msra.mxu0 %v2511
        %2641 = vmatprep.subr.bf16.mxu0 %v2514
        %2642 = vmatpush1.bf16.msra.mxu0 %v2513
        %2643 = vmatprep.subr.bf16.mxu0 %v2516
        %2644 = vmatpush1.bf16.msra.mxu0 %v2515
        %2645 = vmatprep.subr.bf16.mxu0 %v2518
        %2646 = vmatpush1.bf16.msra.mxu0 %v2517
        %2647 = vmatprep.subr.bf16.mxu0 %v2520
        %2648 = vmatpush1.bf16.msra.mxu0 %v2519
        %2649 = vmatprep.mubr.bf16.mxu0 %v2214
        %2650 = vmatmul.mubr.bf16.gmra.mrb[0].mxu0 %v2213
        %v2651 = vpop.f32.mrb[0].mxu0
        %v2652 = vadd.f32 %v2290, %v2651
        %v2653 = vpop.f32.mrb[0].mxu0
        %v2654 = vadd.f32 %v2294, %v2653
        %v2655 = vpop.f32.mrb[0].mxu0
        %v2656 = vadd.f32 %v2290, %v2655
        %v2657 = vpop.f32.mrb[0].mxu0
        %v2658 = vadd.f32 %v2294, %v2657
        %2659 = vmatprep.mubr.bf16.mxu0 %v2218
        %2660 = vmatmul.mubr.bf16.gmra.mrb[0].mxu0 %v2217
        %v2661 = vpop.f32.mrb[0].mxu0
        %v2662 = vadd.f32 %v2290, %v2661
        %v2663 = vpop.f32.mrb[0].mxu0
        %v2664 = vadd.f32 %v2294, %v2663
        %v2665 = vpop.f32.mrb[0].mxu0
        %v2666 = vadd.f32 %v2290, %v2665
        %v2667 = vpop.f32.mrb[0].mxu0
        %v2668 = vadd.f32 %v2294, %v2667
        %2669 = vdwg.mxu0
        %2670 = vmatprep.subr.bf16.mxu0 %v2522
        %2671 = vmatpush1.bf16.msra.mxu0 %v2521
        %2672 = vmatprep.subr.bf16.mxu0 %v2524
        %2673 = vmatpush1.bf16.msra.mxu0 %v2523
        %2674 = vmatprep.subr.bf16.mxu0 %v2526
        %2675 = vmatpush1.bf16.msra.mxu0 %v2525
        %2676 = vmatprep.subr.bf16.mxu0 %v2528
        %2677 = vmatpush1.bf16.msra.mxu0 %v2527
        %2678 = vmatprep.subr.bf16.mxu0 %v2530
        %2679 = vmatpush1.bf16.msra.mxu0 %v2529
        %2680 = vmatprep.subr.bf16.mxu0 %v2532
        %2681 = vmatpush1.bf16.msra.mxu0 %v2531
        %2682 = vmatprep.subr.bf16.mxu0 %v2534
        %2683 = vmatpush1.bf16.msra.mxu0 %v2533
        %2684 = vmatprep.subr.bf16.mxu0 %v2536
        %2685 = vmatpush1.bf16.msra.mxu0 %v2535
        %2686 = vmatprep.subr.bf16.mxu0 %v2538
        %2687 = vmatpush1.bf16.msra.mxu0 %v2537
        %2688 = vmatprep.subr.bf16.mxu0 %v2540
        %2689 = vmatpush1.bf16.msra.mxu0 %v2539
        %2690 = vmatprep.subr.bf16.mxu0 %v2542
        %2691 = vmatpush1.bf16.msra.mxu0 %v2541
        %2692 = vmatprep.subr.bf16.mxu0 %v2544
        %2693 = vmatpush1.bf16.msra.mxu0 %v2543
        %2694 = vmatprep.subr.bf16.mxu0 %v2546
        %2695 = vmatpush1.bf16.msra.mxu0 %v2545
        %2696 = vmatprep.subr.bf16.mxu0 %v2548
        %2697 = vmatpush1.bf16.msra.mxu0 %v2547
        %2698 = vmatprep.subr.bf16.mxu0 %v2550
        %2699 = vmatpush1.bf16.msra.mxu0 %v2549
        %2700 = vmatprep.subr.bf16.mxu0 %v2552
        %2701 = vmatpush1.bf16.msra.mxu0 %v2551
        %2702 = vmatprep.mubr.bf16.mxu0 %v2216
        %2703 = vmatmul.mubr.bf16.gmra.mrb[0].mxu0 %v2215
        %v2704 = vpop.f32.mrb[0].mxu0
        %v2705 = vadd.f32 %v2652, %v2704
        %v2706 = vpop.f32.mrb[0].mxu0
        %v2707 = vadd.f32 %v2654, %v2706
        %v2708 = vpop.f32.mrb[0].mxu0
        %v2709 = vadd.f32 %v2656, %v2708
        %v2710 = vpop.f32.mrb[0].mxu0
        %v2711 = vadd.f32 %v2658, %v2710
        %2712 = vmatprep.mubr.bf16.mxu0 %v2220
        %2713 = vmatmul.mubr.bf16.gmra.mrb[0].mxu0 %v2219
        %v2714 = vpop.f32.mrb[0].mxu0
        %v2715 = vadd.f32 %v2662, %v2714
        %v2716 = vpop.f32.mrb[0].mxu0
        %v2717 = vadd.f32 %v2664, %v2716
        %v2718 = vpop.f32.mrb[0].mxu0
        %v2719 = vadd.f32 %v2666, %v2718
        %v2720 = vpop.f32.mrb[0].mxu0
        %v2721 = vadd.f32 %v2668, %v2720
        %2722 = vdwg.mxu0
        %v2723 = vmax.f32 %v2705, 0.0
        %v2724 = vmax.f32 %v2707, 0.0
        %v2725 = vmax.f32 %v2709, 0.0
        %v2726 = vmax.f32 %v2711, 0.0
        %v2727 = vmax.f32 %v2715, 0.0
        %v2728 = vmax.f32 %v2717, 0.0
        %v2729 = vmax.f32 %v2719, 0.0
        %v2730 = vmax.f32 %v2721, 0.0
        %v2731 = vpack.c.bf16 %v2725, %v2723
        %v2732 = vpack.c.bf16 %v2726, %v2724
        %v2733 = vpack.c.bf16 %v2729, %v2727
        %v2734 = vpack.c.bf16 %v2730, %v2728
        %v2735 = vld [vmem:[#allocation8] sm:$0xf]
        %v2736 = vld [vmem:[#allocation8 + $0x4] sm:$0xf]
        %v2737 = vld [vmem:[#allocation8 + $0x8] sm:$0xf]
        %v2738 = vld [vmem:[#allocation8 + $0xc] sm:$0xf]
        %v2739 = vld [vmem:[#allocation8 + $0x10] sm:$0xf]
        %v2740 = vld [vmem:[#allocation8 + $0x14] sm:$0xf]
        %v2741 = vld [vmem:[#allocation8 + $0x18] sm:$0xf]
        %v2742 = vld [vmem:[#allocation8 + $0x1c] sm:$0xf]
        %v2743 = vld [vmem:[#allocation8 + $0x20] sm:$0xf]
        %v2744 = vld [vmem:[#allocation8 + $0x24] sm:$0xf]
        %v2745 = vld [vmem:[#allocation8 + $0x28] sm:$0xf]
        %v2746 = vld [vmem:[#allocation8 + $0x2c] sm:$0xf]
        %v2747 = vld [vmem:[#allocation8 + $0x30] sm:$0xf]
        %v2748 = vld [vmem:[#allocation8 + $0x34] sm:$0xf]
        %v2749 = vld [vmem:[#allocation8 + $0x38] sm:$0xf]
        %v2750 = vld [vmem:[#allocation8 + $0x3c] sm:$0xf]
        %v2751 = vld [vmem:[#allocation8 + $0x40] sm:$0xf]
        %v2752 = vld [vmem:[#allocation8 + $0x44] sm:$0xf]
        %v2753 = vld [vmem:[#allocation8 + $0x48] sm:$0xf]
        %v2754 = vld [vmem:[#allocation8 + $0x4c] sm:$0xf]
        %v2755 = vld [vmem:[#allocation8 + $0x50] sm:$0xf]
        %v2756 = vld [vmem:[#allocation8 + $0x54] sm:$0xf]
        %v2757 = vld [vmem:[#allocation8 + $0x58] sm:$0xf]
        %v2758 = vld [vmem:[#allocation8 + $0x5c] sm:$0xf]
        %v2759 = vld [vmem:[#allocation8 + $0x60] sm:$0xf]
        %v2760 = vld [vmem:[#allocation8 + $0x64] sm:$0xf]
        %v2761 = vld [vmem:[#allocation8 + $0x68] sm:$0xf]
        %v2762 = vld [vmem:[#allocation8 + $0x6c] sm:$0xf]
        %v2763 = vld [vmem:[#allocation8 + $0x70] sm:$0xf]
        %v2764 = vld [vmem:[#allocation8 + $0x74] sm:$0xf]
        %v2765 = vld [vmem:[#allocation8 + $0x78] sm:$0xf]
        %v2766 = vld [vmem:[#allocation8 + $0x7c] sm:$0xf]
        %v2767 = vld [vmem:[%s6] sm:$0x1]
        %v2769 = vlaneseq
        %v2770 = vshrl.u32 %v2769, 7
        %v2771 = vsub.s32 0, %v2770
        %v2772 = vrot.slane %v2767, %v2771
        %v2806 = vunpack.c.l.b16 %v2735
        %v2807 = vunpack.c.l.b16 %v2736
        %v2808 = vunpack.c.l.b16 %v2737
        %v2809 = vunpack.c.l.b16 %v2738
        %v2810 = vunpack.c.l.b16 %v2739
        %v2811 = vunpack.c.l.b16 %v2740
        %v2812 = vunpack.c.l.b16 %v2741
        %v2813 = vunpack.c.l.b16 %v2742
        %v2814 = vunpack.c.l.b16 %v2743
        %v2815 = vunpack.c.l.b16 %v2744
        %v2816 = vunpack.c.l.b16 %v2745
        %v2817 = vunpack.c.l.b16 %v2746
        %v2818 = vunpack.c.l.b16 %v2747
        %v2819 = vunpack.c.l.b16 %v2748
        %v2820 = vunpack.c.l.b16 %v2749
        %v2821 = vunpack.c.l.b16 %v2750
        %v2822 = vunpack.c.l.b16 %v2751
        %v2823 = vunpack.c.l.b16 %v2752
        %v2824 = vunpack.c.l.b16 %v2753
        %v2825 = vunpack.c.l.b16 %v2754
        %v2826 = vunpack.c.l.b16 %v2755
        %v2827 = vunpack.c.l.b16 %v2756
        %v2828 = vunpack.c.l.b16 %v2757
        %v2829 = vunpack.c.l.b16 %v2758
        %v2830 = vunpack.c.l.b16 %v2759
        %v2831 = vunpack.c.l.b16 %v2760
        %v2832 = vunpack.c.l.b16 %v2761
        %v2833 = vunpack.c.l.b16 %v2762
        %v2834 = vunpack.c.l.b16 %v2763
        %v2835 = vunpack.c.l.b16 %v2764
        %v2836 = vunpack.c.l.b16 %v2765
        %v2837 = vunpack.c.l.b16 %v2766
        %v2838 = vpack.c.b16 %v2807, %v2806
        %v2839 = vpack.c.b16 %v2809, %v2808
        %v2840 = vpack.c.b16 %v2811, %v2810
        %v2841 = vpack.c.b16 %v2813, %v2812
        %v2842 = vpack.c.b16 %v2815, %v2814
        %v2843 = vpack.c.b16 %v2817, %v2816
        %v2844 = vpack.c.b16 %v2819, %v2818
        %v2845 = vpack.c.b16 %v2821, %v2820
        %v2846 = vpack.c.b16 %v2823, %v2822
        %v2847 = vpack.c.b16 %v2825, %v2824
        %v2848 = vpack.c.b16 %v2827, %v2826
        %v2849 = vpack.c.b16 %v2829, %v2828
        %v2850 = vpack.c.b16 %v2831, %v2830
        %v2851 = vpack.c.b16 %v2833, %v2832
        %v2852 = vpack.c.b16 %v2835, %v2834
        %v2853 = vpack.c.b16 %v2837, %v2836
        %2870 = vmatprep.subr.bf16.mxu0 0
        %2871 = vmatpush1.bf16.msra.mxu0 %v2838
        %2872 = vmatprep.subr.bf16.mxu0 0
        %2873 = vmatpush1.bf16.msra.mxu0 %v2839
        %2874 = vmatprep.subr.bf16.mxu0 0
        %2875 = vmatpush1.bf16.msra.mxu0 %v2840
        %2876 = vmatprep.subr.bf16.mxu0 0
        %2877 = vmatpush1.bf16.msra.mxu0 %v2841
        %2878 = vmatprep.subr.bf16.mxu0 0
        %2879 = vmatpush1.bf16.msra.mxu0 %v2842
        %2880 = vmatprep.subr.bf16.mxu0 0
        %2881 = vmatpush1.bf16.msra.mxu0 %v2843
        %2882 = vmatprep.subr.bf16.mxu0 0
        %2883 = vmatpush1.bf16.msra.mxu0 %v2844
        %2884 = vmatprep.subr.bf16.mxu0 0
        %2885 = vmatpush1.bf16.msra.mxu0 %v2845
        %2886 = vmatprep.subr.bf16.mxu0 0
        %2887 = vmatpush1.bf16.msra.mxu0 %v2846
        %2888 = vmatprep.subr.bf16.mxu0 0
        %2889 = vmatpush1.bf16.msra.mxu0 %v2847
        %2890 = vmatprep.subr.bf16.mxu0 0
        %2891 = vmatpush1.bf16.msra.mxu0 %v2848
        %2892 = vmatprep.subr.bf16.mxu0 0
        %2893 = vmatpush1.bf16.msra.mxu0 %v2849
        %2894 = vmatprep.subr.bf16.mxu0 0
        %2895 = vmatpush1.bf16.msra.mxu0 %v2850
        %2896 = vmatprep.subr.bf16.mxu0 0
        %2897 = vmatpush1.bf16.msra.mxu0 %v2851
        %2898 = vmatprep.subr.bf16.mxu0 0
        %2899 = vmatpush1.bf16.msra.mxu0 %v2852
        %2900 = vmatprep.subr.bf16.mxu0 0
        %2901 = vmatpush1.bf16.msra.mxu0 %v2853
        %2902 = vmatprep.mubr.bf16.mxu0 %v2732
        %2903 = vmatmul.mubr.bf16.gmra.mrb[0].mxu0 %v2731
        %v2904 = vpop.f32.mrb[0].mxu0
        %v2905 = vadd.f32 %v2772, %v2904
        %v2906 = vpop.f32.mrb[0].mxu0
        %v2907 = vpop.f32.mrb[0].mxu0
        %v2908 = vadd.f32 %v2772, %v2907
        %v2909 = vpop.f32.mrb[0].mxu0
        %2910 = vmatprep.mubr.bf16.mxu0 %v2734
        %2911 = vmatmul.mubr.bf16.gmra.mrb[0].mxu0 %v2733
        %v2912 = vpop.f32.mrb[0].mxu0
        %v2913 = vadd.f32 %v2772, %v2912
        %v2914 = vpop.f32.mrb[0].mxu0
        %v2915 = vpop.f32.mrb[0].mxu0
        %v2916 = vadd.f32 %v2772, %v2915
        %v2917 = vpop.f32.mrb[0].mxu0
        %2918 = vdwg.mxu0
        %v2919 = vmax.f32 %v2905, 0.0
        %v2920 = vmax.f32 %v2908, 0.0
        %v2921 = vmax.f32 %v2913, 0.0
        %v2922 = vmax.f32 %v2916, 0.0
        %v2923 = vpack.c.bf16 %v2920, %v2919
        %v2924 = vpack.c.bf16 %v2922, %v2921
        %v2925 = vld [vmem:[#allocation10] sm:$0xf]
        %v2926 = vld [vmem:[#allocation10 + $0x4] sm:$0xf]
        %v2927 = vld [vmem:[#allocation10 + $0x8] sm:$0xf]
        %v2928 = vld [vmem:[#allocation10 + $0xc] sm:$0xf]
        %v2929 = vld [vmem:[#allocation10 + $0x10] sm:$0xf]
        %v2930 = vld [vmem:[#allocation10 + $0x14] sm:$0xf]
        %v2931 = vld [vmem:[#allocation10 + $0x18] sm:$0xf]
        %v2932 = vld [vmem:[#allocation10 + $0x1c] sm:$0xf]
        %v2933 = vld [vmem:[#allocation10 + $0x20] sm:$0xf]
        %v2934 = vld [vmem:[#allocation10 + $0x24] sm:$0xf]
        %v2935 = vld [vmem:[#allocation10 + $0x28] sm:$0xf]
        %v2936 = vld [vmem:[#allocation10 + $0x2c] sm:$0xf]
        %v2937 = vld [vmem:[#allocation10 + $0x30] sm:$0xf]
        %v2938 = vld [vmem:[#allocation10 + $0x34] sm:$0xf]
        %v2939 = vld [vmem:[#allocation10 + $0x38] sm:$0xf]
        %v2940 = vld [vmem:[#allocation10 + $0x3c] sm:$0xf]
        %v2941 = vld [vmem:[%s8] sm:$0x1]
        %v2943 = vlaneseq
        %v2944 = vshrl.u32 %v2943, 7
        %v2945 = vsub.s32 0, %v2944
        %v2946 = vrot.slane %v2941, %v2945
        %v2964 = vunpack.c.l.b16 %v2925
        %v2965 = vunpack.c.l.b16 %v2926
        %v2966 = vunpack.c.l.b16 %v2927
        %v2967 = vunpack.c.l.b16 %v2928
        %v2968 = vunpack.c.l.b16 %v2929
        %v2969 = vunpack.c.l.b16 %v2930
        %v2970 = vunpack.c.l.b16 %v2931
        %v2971 = vunpack.c.l.b16 %v2932
        %v2972 = vunpack.c.l.b16 %v2933
        %v2973 = vunpack.c.l.b16 %v2934
        %v2974 = vunpack.c.l.b16 %v2935
        %v2975 = vunpack.c.l.b16 %v2936
        %v2976 = vunpack.c.l.b16 %v2937
        %v2977 = vunpack.c.l.b16 %v2938
        %v2978 = vunpack.c.l.b16 %v2939
        %v2979 = vunpack.c.l.b16 %v2940
        %v2980 = vpack.c.b16 %v2965, %v2964
        %v2981 = vpack.c.b16 %v2967, %v2966
        %v2982 = vpack.c.b16 %v2969, %v2968
        %v2983 = vpack.c.b16 %v2971, %v2970
        %v2984 = vpack.c.b16 %v2973, %v2972
        %v2985 = vpack.c.b16 %v2975, %v2974
        %v2986 = vpack.c.b16 %v2977, %v2976
        %v2987 = vpack.c.b16 %v2979, %v2978
        %2996 = vmatprep.subr.bf16.mxu0 0
        %2997 = vmatpush1.bf16.msra.mxu0 %v2980
        %2998 = vmatprep.subr.bf16.mxu0 0
        %2999 = vmatpush1.bf16.msra.mxu0 %v2981
        %3000 = vmatprep.subr.bf16.mxu0 0
        %3001 = vmatpush1.bf16.msra.mxu0 %v2982
        %3002 = vmatprep.subr.bf16.mxu0 0
        %3003 = vmatpush1.bf16.msra.mxu0 %v2983
        %3004 = vmatprep.subr.bf16.mxu0 0
        %3005 = vmatpush1.bf16.msra.mxu0 %v2984
        %3006 = vmatprep.subr.bf16.mxu0 0
        %3007 = vmatpush1.bf16.msra.mxu0 %v2985
        %3008 = vmatprep.subr.bf16.mxu0 0
        %3009 = vmatpush1.bf16.msra.mxu0 %v2986
        %3010 = vmatprep.subr.bf16.mxu0 0
        %3011 = vmatpush1.bf16.msra.mxu0 %v2987
        %3012 = vmatprep.subr.bf16.mxu0 0
        %3013 = vmatpush1.bf16.msra.mxu0 0
        %3014 = vmatprep.subr.bf16.mxu0 0
        %3015 = vmatpush1.bf16.msra.mxu0 0
        %3016 = vmatprep.subr.bf16.mxu0 0
        %3017 = vmatpush1.bf16.msra.mxu0 0
        %3018 = vmatprep.subr.bf16.mxu0 0
        %3019 = vmatpush1.bf16.msra.mxu0 0
        %3020 = vmatprep.subr.bf16.mxu0 0
        %3021 = vmatpush1.bf16.msra.mxu0 0
        %3022 = vmatprep.subr.bf16.mxu0 0
        %3023 = vmatpush1.bf16.msra.mxu0 0
        %3024 = vmatprep.subr.bf16.mxu0 0
        %3025 = vmatpush1.bf16.msra.mxu0 0
        %3026 = vmatprep.subr.bf16.mxu0 0
        %3027 = vmatpush1.bf16.msra.mxu0 0
        %3028 = vmatprep.mubr.bf16.mxu0 0
        %3029 = vmatmul.mubr.bf16.gmra.mrb[0].mxu0 %v2923
        %v3030 = vpop.f32.mrb[0].mxu0
        %v3031 = vadd.f32 %v2946, %v3030
        %v3032 = vpop.f32.mrb[0].mxu0
        %v3033 = vpop.f32.mrb[0].mxu0
        %v3034 = vadd.f32 %v2946, %v3033
        %v3035 = vpop.f32.mrb[0].mxu0
        %3036 = vmatprep.mubr.bf16.mxu0 0
        %3037 = vmatmul.mubr.bf16.gmra.mrb[0].mxu0 %v2924
        %v3038 = vpop.f32.mrb[0].mxu0
        %v3039 = vadd.f32 %v2946, %v3038
        %v3040 = vpop.f32.mrb[0].mxu0
        %v3041 = vpop.f32.mrb[0].mxu0
        %v3042 = vadd.f32 %v2946, %v3041
        %v3043 = vpop.f32.mrb[0].mxu0
        %3044 = vdwg.mxu0
        %v3045 = vmax.f32 %v3031, 0.0
        %v3046 = vmax.f32 %v3034, 0.0
        %v3047 = vmax.f32 %v3039, 0.0
        %v3048 = vmax.f32 %v3042, 0.0
        %v3049 = vpack.c.bf16 %v3046, %v3045
        %v3050 = vpack.c.bf16 %v3048, %v3047
        %v3051 = vld [vmem:[#allocation11] sm:$0xf]
        %v3052 = vld [vmem:[#allocation11 + $0x4] sm:$0xf]
        %v3053 = vld [vmem:[#allocation11 + $0x8] sm:$0xf]
        %v3054 = vld [vmem:[#allocation11 + $0xc] sm:$0xf]
        %v3055 = vld [vmem:[#allocation11 + $0x10] sm:$0xf]
        %v3056 = vld [vmem:[#allocation11 + $0x14] sm:$0xf]
        %v3057 = vld [vmem:[#allocation11 + $0x18] sm:$0xf]
        %v3058 = vld [vmem:[#allocation11 + $0x1c] sm:$0xf]
        %v3059 = vld [vmem:[#allocation11 + $0x20] sm:$0xf]
        %v3060 = vld [vmem:[#allocation11 + $0x24] sm:$0xf]
        %v3061 = vld [vmem:[#allocation11 + $0x28] sm:$0xf]
        %v3062 = vld [vmem:[#allocation11 + $0x2c] sm:$0xf]
        %v3063 = vld [vmem:[#allocation11 + $0x30] sm:$0xf]
        %v3064 = vld [vmem:[#allocation11 + $0x34] sm:$0xf]
        %v3065 = vld [vmem:[#allocation11 + $0x38] sm:$0xf]
        %v3066 = vld [vmem:[#allocation11 + $0x3c] sm:$0xf]
        %v3067 = vld [vmem:[%s10] sm:$0x1]
        %v3069 = vlaneseq
        %v3070 = vshrl.u32 %v3069, 7
        %v3071 = vsub.s32 0, %v3070
        %v3072 = vrot.slane %v3067, %v3071
        %v3090 = vunpack.c.l.b16 %v3051
        %v3091 = vunpack.c.l.b16 %v3052
        %v3092 = vunpack.c.l.b16 %v3053
        %v3093 = vunpack.c.l.b16 %v3054
        %v3094 = vunpack.c.l.b16 %v3055
        %v3095 = vunpack.c.l.b16 %v3056
        %v3096 = vunpack.c.l.b16 %v3057
        %v3097 = vunpack.c.l.b16 %v3058
        %v3098 = vunpack.c.l.b16 %v3059
        %v3099 = vunpack.c.l.b16 %v3060
        %v3100 = vunpack.c.l.b16 %v3061
        %v3101 = vunpack.c.l.b16 %v3062
        %v3102 = vunpack.c.l.b16 %v3063
        %v3103 = vunpack.c.l.b16 %v3064
        %v3104 = vunpack.c.l.b16 %v3065
        %v3105 = vunpack.c.l.b16 %v3066
        %v3106 = vpack.c.b16 %v3091, %v3090
        %v3107 = vpack.c.b16 %v3093, %v3092
        %v3108 = vpack.c.b16 %v3095, %v3094
        %v3109 = vpack.c.b16 %v3097, %v3096
        %v3110 = vpack.c.b16 %v3099, %v3098
        %v3111 = vpack.c.b16 %v3101, %v3100
        %v3112 = vpack.c.b16 %v3103, %v3102
        %v3113 = vpack.c.b16 %v3105, %v3104
        %3122 = vmatprep.subr.bf16.mxu0 0
        %3123 = vmatpush1.bf16.msra.mxu0 %v3106
        %3124 = vmatprep.subr.bf16.mxu0 0
        %3125 = vmatpush1.bf16.msra.mxu0 %v3107
        %3126 = vmatprep.subr.bf16.mxu0 0
        %3127 = vmatpush1.bf16.msra.mxu0 %v3108
        %3128 = vmatprep.subr.bf16.mxu0 0
        %3129 = vmatpush1.bf16.msra.mxu0 %v3109
        %3130 = vmatprep.subr.bf16.mxu0 0
        %3131 = vmatpush1.bf16.msra.mxu0 %v3110
        %3132 = vmatprep.subr.bf16.mxu0 0
        %3133 = vmatpush1.bf16.msra.mxu0 %v3111
        %3134 = vmatprep.subr.bf16.mxu0 0
        %3135 = vmatpush1.bf16.msra.mxu0 %v3112
        %3136 = vmatprep.subr.bf16.mxu0 0
        %3137 = vmatpush1.bf16.msra.mxu0 %v3113
        %3138 = vmatprep.subr.bf16.mxu0 0
        %3139 = vmatpush1.bf16.msra.mxu0 0
        %3140 = vmatprep.subr.bf16.mxu0 0
        %3141 = vmatpush1.bf16.msra.mxu0 0
        %3142 = vmatprep.subr.bf16.mxu0 0
        %3143 = vmatpush1.bf16.msra.mxu0 0
        %3144 = vmatprep.subr.bf16.mxu0 0
        %3145 = vmatpush1.bf16.msra.mxu0 0
        %3146 = vmatprep.subr.bf16.mxu0 0
        %3147 = vmatpush1.bf16.msra.mxu0 0
        %3148 = vmatprep.subr.bf16.mxu0 0
        %3149 = vmatpush1.bf16.msra.mxu0 0
        %3150 = vmatprep.subr.bf16.mxu0 0
        %3151 = vmatpush1.bf16.msra.mxu0 0
        %3152 = vmatprep.subr.bf16.mxu0 0
        %3153 = vmatpush1.bf16.msra.mxu0 0
        %3154 = vmatprep.mubr.bf16.mxu0 0
        %3155 = vmatmul.mubr.bf16.gmra.mrb[0].mxu0 %v3049
        %v3156 = vpop.f32.mrb[0].mxu0
        %v3157 = vadd.f32 %v3072, %v3156
        %v3158 = vpop.f32.mrb[0].mxu0
        %v3159 = vpop.f32.mrb[0].mxu0
        %v3160 = vadd.f32 %v3072, %v3159
        %v3161 = vpop.f32.mrb[0].mxu0
        %3162 = vmatprep.mubr.bf16.mxu0 0
        %3163 = vmatmul.mubr.bf16.gmra.mrb[0].mxu0 %v3050
        %v3164 = vpop.f32.mrb[0].mxu0
        %v3165 = vadd.f32 %v3072, %v3164
        %v3166 = vpop.f32.mrb[0].mxu0
        %v3167 = vpop.f32.mrb[0].mxu0
        %v3168 = vadd.f32 %v3072, %v3167
        %v3169 = vpop.f32.mrb[0].mxu0
        %3170 = vdwg.mxu0
        %v3171 = vmax.f32 %v3157, 0.0
        %v3172 = vmax.f32 %v3160, 0.0
        %v3173 = vmax.f32 %v3165, 0.0
        %v3174 = vmax.f32 %v3168, 0.0
        %3175 = vst [vmem:[%s478] sm:$0xff] %v3171
        %3176 = vst [vmem:[%s478 + $0x8] sm:$0xff] %v3172
        %3177 = vst [vmem:[%s478 + $0x10] sm:$0xff] %v3173
        %3178 = vst [vmem:[%s478 + $0x18] sm:$0xff] %v3174
        %s3179 = sand.u32 %s275, 1
        %s3180 = scalar_lea.sflag [#allocation4], %s3179
        %s3181 = sand.u32 %s275, 1
        %s3182 = smul.addr %s3181, 32
        %s3183 = scalar_lea.vmem [#allocation13], %s3182
        // Predicated region
        $region89: #{tpu_custom_call.1} parent=63 // pred_check
          %p3184 = pneg %p285
        $region90: #{tpu_custom_call.1} parent=63 // pred_check_branch
          %3186 = sbr.rel (%p3184) target = $region92
        $region91: #{tpu_custom_call.1} parent=63 // pred_region
          %s3187 = smul.u32 4, %s31
          %s3189 = ssub.s32 512, 512
          %3190 = vsyncadd %s3180, %s3189
          %s3191 = smul.addr %s3187, 128
          %s3192 = scalar_lea.hbm %s11, %s3191
          %s3193 = sshll.u32 %s3183, 4
          %s3194 = int_to_ptr.vmem [resolvable:$true] %s3193
          %3199 = dma.vmem_to_hbm [thread:$0]  %s3194, 512, %s3192, %s3180, 128, 128, 8
        $region92: #{tpu_custom_call.1} parent=63 // pred_fallthru
          _
      $region64: #{tpu_custom_call.1} parent=5 // pred_fallthru
        _
      %p3200 = scmp.le.s32.totalorder 2, %s26
      // Predicated region
      $region93: #{tpu_custom_call.1} parent=5 // pred_check
        %p3201 = pneg %p3200
      $region94: #{tpu_custom_call.1} parent=5 // pred_check_branch
        %3203 = sbr.rel (%p3201) target = $region96
      $region95: #{tpu_custom_call.1} parent=5 // pred_region
        %s3204 = ssub.s32 %s26, 2
        // Predicated region
        $region97: #{tpu_custom_call.1} parent=95 // pred_check
          %p3205 = pneg %p291
        $region98: #{tpu_custom_call.1} parent=95 // pred_check_branch
          %3207 = sbr.rel (%p3205) target = $region100
        $region99: #{tpu_custom_call.1} parent=95 // pred_region
          %s3208 = sand.u32 %s276, 1
          %s3209 = scalar_lea.sflag [#allocation4], %s3208
          %s3210 = sand.u32 %s276, 1
          %s3211 = smul.addr %s3210, 32
          %s3212 = scalar_lea.vmem [#allocation13], %s3211
          %3213 = dma.done %s3209, 512
        $region100: #{tpu_custom_call.1} parent=95 // pred_fallthru
          _
      $region96: #{tpu_custom_call.1} parent=5 // pred_fallthru
        _
    $region6: #{tpu_custom_call.1} parent=1 // loop_footer
      %s30 = sadd.s32 1, %s26
    $region7: #{tpu_custom_call.1} parent=1 // loop_footer_branch
      %25 = sbr.rel target = $region3
    $region8: #{tpu_custom_call.1} parent=1 // loop_exit
      _
    %3214 = vsyncpa [#allocation3], 1
    %s3215 = scalar_lea.sflag [#allocation3], 1
    %3216 = vsyncpa %s3215, 1
    %3217 = vsyncpa [#allocation6], 1
    %3218 = vsyncpa [#allocation9], 1
    %3219 = vsyncpa [#allocation12], 1
    %3220 = vsyncpa [#allocation4], 1
    %s3221 = scalar_lea.sflag [#allocation4], 1
    %3222 = vsyncpa %s3221, 1

</llo_original>
